<compile_context>
chip_gen: v5e
topology: v5e:2x2
jax: 0.10.0
libtpu: 0.0.40
codegen_flags: <defaults>
</compile_context>

<pallas_src>
import functools

import jax
import jax.numpy as jnp
from jax import lax
from jax.experimental import pallas as pl
from jax.experimental.pallas import tpu as pltpu


# --------------------------------------------------------------------------
# helpers
# --------------------------------------------------------------------------
def _pair(v):
    return (v, v) if isinstance(v, int) else tuple(v)


def _round_up(x, m):
    return ((x + m - 1) // m) * m


# --------------------------------------------------------------------------
# Pallas kernel: fused phase-conv (all s_h*s_w phases of the transposed conv)
# --------------------------------------------------------------------------
def _make_kernel(tqh, dt_h, dt_w, wq):
    def kernel(w_ref, x_ref, o_ref):
        # w_ref : (dt_h*dt_w, Nc_p, Cin_p)  per-tap weight matrices (resident)
        # x_ref : (Hp_p, Cin_p, Wp)         whole zero-padded image of batch b
        # o_ref : (tqh, Nc_p, Wq)           output q-row tile (written once)
        row_base = pl.program_id(1) * tqh
        for r in range(tqh):                                  # static unroll
            acc = None
            for dh in range(dt_h):
                xrow = x_ref[row_base + r + dh]               # (Cin_p, Wp)
                for dw in range(dt_w):
                    w_tap = w_ref[dh * dt_w + dw]             # (Nc_p, Cin_p)
                    c = jnp.dot(w_tap, xrow[:, dw:dw + wq],
                                preferred_element_type=jnp.float32)
                    acc = c if acc is None else acc + c
            o_ref[r] = acc.astype(o_ref.dtype)

    return kernel


# --------------------------------------------------------------------------
# ConvTranspose2d forward (bias=False)
# --------------------------------------------------------------------------
@functools.partial(jax.jit,
                   static_argnames=("stride", "padding", "tqh", "use_bf16"))
def conv_transpose2d(x_nchw, weight, *, stride=1, padding=0,
                     tqh=8, use_bf16=True):
    s_h, s_w = _pair(stride)
    p_h, p_w = _pair(padding)
    cin, cout, kh, kw = weight.shape
    B, C, H, W = x_nchw.shape
    assert C == cin, (C, cin)

    dt_h = -(-kh // s_h)                     # taps per phase = ceil(k / s)
    dt_w = -(-kw // s_w)
    hq = H + dt_h - 1                        # q-domain output rows per phase
    wq = W + dt_w - 1
    nc = s_h * s_w * cout                    # all phases stacked as channels
    ho = (H - 1) * s_h - 2 * p_h + kh
    wo = (W - 1) * s_w - 2 * p_w + kw

    in_dtype = jnp.bfloat16 if use_bf16 else jnp.float32
    cin_p = _round_up(cin, 16 if use_bf16 else 8)   # bf16 sublane pairing
    nc_p = _round_up(nc, 8)
    tqh = max(1, min(tqh, hq))
    hq_pad = _round_up(hq, tqh)              # no masked boundary row-tiles
    hp_p = hq_pad + dt_h - 1                 # padded image rows the taps touch
    wp = wq + dt_w - 1

    # ---- x -> (B, Hp_p, Cin_p, Wp): zero halo, Cin in sublanes, W in lanes --
    xt = jnp.transpose(x_nchw, (0, 2, 1, 3)).astype(in_dtype)   # (B,H,Cin,W)
    x_p = jnp.pad(xt, ((0, 0),
                       (dt_h - 1, hp_p - (dt_h - 1) - H),
                       (0, cin_p - cin),
                       (dt_w - 1, dt_w - 1)))

    # ---- weight -> flipped per-tap matrices W2T[dh*dt_w+dw, nc, ci] ---------
    # W2T[dh,dw,(rh,rw,co),ci] = w[ci,co, rh+(dt_h-1-dh)*s_h, rw+(dt_w-1-dw)*s_w]
    # (zero where the kernel index exceeds kh/kw).
    wpk = jnp.pad(weight, ((0, 0), (0, 0),
                           (0, dt_h * s_h - kh), (0, dt_w * s_w - kw)))
    wpk = wpk.reshape(cin, cout, dt_h, s_h, dt_w, s_w)
    wpk = jnp.flip(wpk, axis=(2, 4))
    w2t = jnp.transpose(wpk, (2, 4, 3, 5, 1, 0))     # (dh, dw, rh, rw, co, ci)
    w2t = w2t.reshape(dt_h * dt_w, nc, cin)
    w2t = jnp.pad(w2t, ((0, 0), (0, nc_p - nc),
                        (0, cin_p - cin))).astype(in_dtype)

    grid = (B, hq_pad // tqh)
    out_conv = pl.pallas_call(
        _make_kernel(tqh, dt_h, dt_w, wq),
        out_shape=jax.ShapeDtypeStruct((B, hq_pad, nc_p, wq), jnp.float32),
        grid=grid,
        in_specs=[
            # per-tap weights: one block, resident across the whole grid
            pl.BlockSpec((dt_h * dt_w, nc_p, cin_p), lambda b, q: (0, 0, 0)),
            # whole padded image of batch b (re-DMA'd only when b changes)
            pl.BlockSpec((None, hp_p, cin_p, wp), lambda b, q: (b, 0, 0, 0)),
        ],
        out_specs=pl.BlockSpec((None, tqh, nc_p, wq), lambda b, q: (b, q, 0, 0)),
        compiler_params=pltpu.CompilerParams(
            dimension_semantics=("parallel", "parallel"),
            vmem_limit_bytes=32 * 1024 * 1024,
        ),
    )(w2t, x_p)

    # ---- pixel-shuffle interleave + padding crop (single pass) --------------
    # TODO(synk): the phase interleave + crop (pure data movement) stays in
    # XLA; interleaved strided output writes are not expressible with static
    # BlockSpecs without an in-kernel lane transpose.
    oc = out_conv[:, :hq, :nc, :]                       # (B, Hq, Nc, Wq)
    oc = oc.reshape(B, hq, s_h, s_w, cout, wq)
    y = jnp.transpose(oc, (0, 4, 1, 2, 5, 3))           # (B,Cout,Hq,s_h,Wq,s_w)
    y = y.reshape(B, cout, hq * s_h, wq * s_w)
    return y[:, :, p_h:p_h + ho, p_w:p_w + wo]          # NCHW, cropped


# --------------------------------------------------------------------------
# Pure-JAX reference (correctness check only)
# --------------------------------------------------------------------------
def conv_transpose2d_ref(x_nchw, weight, stride=1, padding=0):
    s_h, s_w = _pair(stride)
    p_h, p_w = _pair(padding)
    cin, cout, kh, kw = weight.shape
    rhs = jnp.transpose(jnp.flip(weight, (2, 3)), (2, 3, 0, 1))   # HWIO
    return lax.conv_general_dilated(
        x_nchw.astype(jnp.float32), rhs.astype(jnp.float32),
        window_strides=(1, 1),
        padding=((kh - 1 - p_h, kh - 1 - p_h), (kw - 1 - p_w, kw - 1 - p_w)),
        lhs_dilation=(s_h, s_w),
        dimension_numbers=("NCHW", "HWIO", "NCHW"))


# --------------------------------------------------------------------------
if __name__ == "__main__":
    B, CIN, H, W = 2, 4, 16, 16
    COUT, K, S, P = 8, 4, 2, 1

    key = jax.random.PRNGKey(0)
    kx, kwgt = jax.random.split(key)
    x = jax.random.normal(kx, (B, CIN, H, W), jnp.float32)
    # PyTorch module init: sf * (2*rand - 1), sf = 1/sqrt(Cout*kh*kw)
    sf = 1.0 / (COUT * K * K) ** 0.5
    weight = sf * (2.0 * jax.random.uniform(kwgt, (CIN, COUT, K, K),
                                            jnp.float32) - 1.0)

    ref = conv_transpose2d_ref(x, weight, stride=S, padding=P)
    Ho = (H - 1) * S - 2 * P + K
    Wo = (W - 1) * S - 2 * P + K

    # f32 MXU path (tight tolerance -> catches any indexing/layout bug)
    out_f32 = jax.block_until_ready(
        conv_transpose2d(x, weight, stride=S, padding=P, use_bf16=False))
    assert out_f32.shape == (B, COUT, Ho, Wo), out_f32.shape
    assert jnp.allclose(out_f32, ref, atol=1e-4, rtol=1e-4), \
        float(jnp.max(jnp.abs(out_f32 - ref)))

    # bf16 MXU path (production setting; looser tolerance for bf16 inputs)
    out = jax.block_until_ready(
        conv_transpose2d(x, weight, stride=S, padding=P, use_bf16=True))
    assert out.shape == (B, COUT, Ho, Wo), out.shape
    assert jnp.allclose(out, ref, atol=5e-2, rtol=5e-2), \
        float(jnp.max(jnp.abs(out - ref)))

    print("KERNEL_OK")
</pallas_src>

<mosaic_0001>
module attributes {stable_mosaic.version = 11 : i64} {
  func.func @kernel(%arg0: i32, %arg1: i32, %arg2: memref<4x32x8xf32, #tpu.memory_space<vmem>>, %arg3: memref<1x25x8x18xf32, #tpu.memory_space<vmem>>, %arg4: memref<1x8x32x17xf32, #tpu.memory_space<vmem>>) attributes {dimension_semantics = [#tpu.dimension_semantics<parallel>, #tpu.dimension_semantics<parallel>], iteration_bounds = array<i64: 2, 3>, scalar_prefetch = 0 : i64, scratch_operands = 0 : i64, tpu.core_type = #tpu.core_type<tc>, window_params = [{pipeline_mode = #tpu.pipeline_mode<synchronous>, transform_indices = @transform_0, window_bounds = array<i64: 4, 32, 8>}, {transform_indices = @transform_1, window_bounds = array<i64: 1, 25, 8, 18>}, {transform_indices = @transform_2, window_bounds = array<i64: 1, 8, 32, 17>}]} {
    %c8_i32 = arith.constant 8 : i32
    %0 = arith.muli %arg1, %c8_i32 : i32
    %c0_i32 = arith.constant 0 : i32
    %1 = arith.addi %0, %c0_i32 : i32
    %c0_i32_0 = arith.constant 0 : i32
    %2 = arith.addi %1, %c0_i32_0 : i32
    %c0 = arith.constant 0 : index
    %3 = arith.index_cast %2 : i32 to index
    %c0_1 = arith.constant 0 : index
    %c0_2 = arith.constant 0 : index
    %4 = vector.load %arg3[%c0, %3, %c0_1, %c0_2] : memref<1x25x8x18xf32, #tpu.memory_space<vmem>>, vector<1x1x8x18xf32>
    %5 = vector.shape_cast %4 : vector<1x1x8x18xf32> to vector<8x18xf32>
    %c0_3 = arith.constant 0 : index
    %c0_4 = arith.constant 0 : index
    %c0_5 = arith.constant 0 : index
    %6 = vector.load %arg2[%c0_3, %c0_4, %c0_5] : memref<4x32x8xf32, #tpu.memory_space<vmem>>, vector<1x32x8xf32>
    %7 = vector.shape_cast %6 : vector<1x32x8xf32> to vector<32x8xf32>
    %8 = vector.extract_strided_slice %5 {offsets = [0, 0], sizes = [8, 17], strides = [1, 1]} : vector<8x18xf32> to vector<8x17xf32>
    %cst = arith.constant dense<0.000000e+00> : vector<32x17xf32>
    %9 = tpu.matmul %7, %8, %cst {dimension_numbers = #tpu.dot_dimension_numbers<[1], [0], [0], [1], [0, 0, 1, 1], [], []>} : vector<32x8xf32>, vector<8x17xf32>, vector<32x17xf32> -> vector<32x17xf32>
    %c1 = arith.constant 1 : index
    %c0_6 = arith.constant 0 : index
    %c0_7 = arith.constant 0 : index
    %10 = vector.load %arg2[%c1, %c0_6, %c0_7] : memref<4x32x8xf32, #tpu.memory_space<vmem>>, vector<1x32x8xf32>
    %11 = vector.shape_cast %10 : vector<1x32x8xf32> to vector<32x8xf32>
    %12 = vector.extract_strided_slice %5 {offsets = [0, 1], sizes = [8, 17], strides = [1, 1]} : vector<8x18xf32> to vector<8x17xf32>
    %cst_8 = arith.constant dense<0.000000e+00> : vector<32x17xf32>
    %13 = tpu.matmul %11, %12, %cst_8 {dimension_numbers = #tpu.dot_dimension_numbers<[1], [0], [0], [1], [0, 0, 1, 1], [], []>} : vector<32x8xf32>, vector<8x17xf32>, vector<32x17xf32> -> vector<32x17xf32>
    %14 = arith.addf %9, %13 : vector<32x17xf32>
    %c0_i32_9 = arith.constant 0 : i32
    %15 = arith.addi %0, %c0_i32_9 : i32
    %c1_i32 = arith.constant 1 : i32
    %16 = arith.addi %15, %c1_i32 : i32
    %c0_10 = arith.constant 0 : index
    %17 = arith.index_cast %16 : i32 to index
    %c0_11 = arith.constant 0 : index
    %c0_12 = arith.constant 0 : index
    %18 = vector.load %arg3[%c0_10, %17, %c0_11, %c0_12] : memref<1x25x8x18xf32, #tpu.memory_space<vmem>>, vector<1x1x8x18xf32>
    %19 = vector.shape_cast %18 : vector<1x1x8x18xf32> to vector<8x18xf32>
    %c2 = arith.constant 2 : index
    %c0_13 = arith.constant 0 : index
    %c0_14 = arith.constant 0 : index
    %20 = vector.load %arg2[%c2, %c0_13, %c0_14] : memref<4x32x8xf32, #tpu.memory_space<vmem>>, vector<1x32x8xf32>
    %21 = vector.shape_cast %20 : vector<1x32x8xf32> to vector<32x8xf32>
    %22 = vector.extract_strided_slice %19 {offsets = [0, 0], sizes = [8, 17], strides = [1, 1]} : vector<8x18xf32> to vector<8x17xf32>
    %cst_15 = arith.constant dense<0.000000e+00> : vector<32x17xf32>
    %23 = tpu.matmul %21, %22, %cst_15 {dimension_numbers = #tpu.dot_dimension_numbers<[1], [0], [0], [1], [0, 0, 1, 1], [], []>} : vector<32x8xf32>, vector<8x17xf32>, vector<32x17xf32> -> vector<32x17xf32>
    %24 = arith.addf %14, %23 : vector<32x17xf32>
    %c3 = arith.constant 3 : index
    %c0_16 = arith.constant 0 : index
    %c0_17 = arith.constant 0 : index
    %25 = vector.load %arg2[%c3, %c0_16, %c0_17] : memref<4x32x8xf32, #tpu.memory_space<vmem>>, vector<1x32x8xf32>
    %26 = vector.shape_cast %25 : vector<1x32x8xf32> to vector<32x8xf32>
    %27 = vector.extract_strided_slice %19 {offsets = [0, 1], sizes = [8, 17], strides = [1, 1]} : vector<8x18xf32> to vector<8x17xf32>
    %cst_18 = arith.constant dense<0.000000e+00> : vector<32x17xf32>
    %28 = tpu.matmul %26, %27, %cst_18 {dimension_numbers = #tpu.dot_dimension_numbers<[1], [0], [0], [1], [0, 0, 1, 1], [], []>} : vector<32x8xf32>, vector<8x17xf32>, vector<32x17xf32> -> vector<32x17xf32>
    %29 = arith.addf %24, %28 : vector<32x17xf32>
    %c0_19 = arith.constant 0 : index
    %c0_20 = arith.constant 0 : index
    %c0_21 = arith.constant 0 : index
    %c0_22 = arith.constant 0 : index
    %30 = vector.load %arg4[%c0_19, %c0_20, %c0_21, %c0_22] : memref<1x8x32x17xf32, #tpu.memory_space<vmem>>, vector<1x1x32x17xf32>
    %31 = vector.shape_cast %30 : vector<1x1x32x17xf32> to vector<32x17xf32>
    %32 = vector.shape_cast %29 : vector<32x17xf32> to vector<1x1x32x17xf32>
    tpu.vector_store %arg4[%c0_19, %c0_20, %c0_21, %c0_22], %32 {strides = array<i32>} : memref<1x8x32x17xf32, #tpu.memory_space<vmem>>, vector<1x1x32x17xf32>,
    %c1_i32_23 = arith.constant 1 : i32
    %33 = arith.addi %0, %c1_i32_23 : i32
    %c0_i32_24 = arith.constant 0 : i32
    %34 = arith.addi %33, %c0_i32_24 : i32
    %c0_25 = arith.constant 0 : index
    %35 = arith.index_cast %34 : i32 to index
    %c0_26 = arith.constant 0 : index
    %c0_27 = arith.constant 0 : index
    %36 = vector.load %arg3[%c0_25, %35, %c0_26, %c0_27] : memref<1x25x8x18xf32, #tpu.memory_space<vmem>>, vector<1x1x8x18xf32>
    %37 = vector.shape_cast %36 : vector<1x1x8x18xf32> to vector<8x18xf32>
    %c0_28 = arith.constant 0 : index
    %c0_29 = arith.constant 0 : index
    %c0_30 = arith.constant 0 : index
    %38 = vector.load %arg2[%c0_28, %c0_29, %c0_30] : memref<4x32x8xf32, #tpu.memory_space<vmem>>, vector<1x32x8xf32>
    %39 = vector.shape_cast %38 : vector<1x32x8xf32> to vector<32x8xf32>
    %40 = vector.extract_strided_slice %37 {offsets = [0, 0], sizes = [8, 17], strides = [1, 1]} : vector<8x18xf32> to vector<8x17xf32>
    %cst_31 = arith.constant dense<0.000000e+00> : vector<32x17xf32>
    %41 = tpu.matmul %39, %40, %cst_31 {dimension_numbers = #tpu.dot_dimension_numbers<[1], [0], [0], [1], [0, 0, 1, 1], [], []>} : vector<32x8xf32>, vector<8x17xf32>, vector<32x17xf32> -> vector<32x17xf32>
    %c1_32 = arith.constant 1 : index
    %c0_33 = arith.constant 0 : index
    %c0_34 = arith.constant 0 : index
    %42 = vector.load %arg2[%c1_32, %c0_33, %c0_34] : memref<4x32x8xf32, #tpu.memory_space<vmem>>, vector<1x32x8xf32>
    %43 = vector.shape_cast %42 : vector<1x32x8xf32> to vector<32x8xf32>
    %44 = vector.extract_strided_slice %37 {offsets = [0, 1], sizes = [8, 17], strides = [1, 1]} : vector<8x18xf32> to vector<8x17xf32>
    %cst_35 = arith.constant dense<0.000000e+00> : vector<32x17xf32>
    %45 = tpu.matmul %43, %44, %cst_35 {dimension_numbers = #tpu.dot_dimension_numbers<[1], [0], [0], [1], [0, 0, 1, 1], [], []>} : vector<32x8xf32>, vector<8x17xf32>, vector<32x17xf32> -> vector<32x17xf32>
    %46 = arith.addf %41, %45 : vector<32x17xf32>
    %c1_i32_36 = arith.constant 1 : i32
    %47 = arith.addi %0, %c1_i32_36 : i32
    %c1_i32_37 = arith.constant 1 : i32
    %48 = arith.addi %47, %c1_i32_37 : i32
    %c0_38 = arith.constant 0 : index
    %49 = arith.index_cast %48 : i32 to index
    %c0_39 = arith.constant 0 : index
    %c0_40 = arith.constant 0 : index
    %50 = vector.load %arg3[%c0_38, %49, %c0_39, %c0_40] : memref<1x25x8x18xf32, #tpu.memory_space<vmem>>, vector<1x1x8x18xf32>
    %51 = vector.shape_cast %50 : vector<1x1x8x18xf32> to vector<8x18xf32>
    %c2_41 = arith.constant 2 : index
    %c0_42 = arith.constant 0 : index
    %c0_43 = arith.constant 0 : index
    %52 = vector.load %arg2[%c2_41, %c0_42, %c0_43] : memref<4x32x8xf32, #tpu.memory_space<vmem>>, vector<1x32x8xf32>
    %53 = vector.shape_cast %52 : vector<1x32x8xf32> to vector<32x8xf32>
    %54 = vector.extract_strided_slice %51 {offsets = [0, 0], sizes = [8, 17], strides = [1, 1]} : vector<8x18xf32> to vector<8x17xf32>
    %cst_44 = arith.constant dense<0.000000e+00> : vector<32x17xf32>
    %55 = tpu.matmul %53, %54, %cst_44 {dimension_numbers = #tpu.dot_dimension_numbers<[1], [0], [0], [1], [0, 0, 1, 1], [], []>} : vector<32x8xf32>, vector<8x17xf32>, vector<32x17xf32> -> vector<32x17xf32>
    %56 = arith.addf %46, %55 : vector<32x17xf32>
    %c3_45 = arith.constant 3 : index
    %c0_46 = arith.constant 0 : index
    %c0_47 = arith.constant 0 : index
    %57 = vector.load %arg2[%c3_45, %c0_46, %c0_47] : memref<4x32x8xf32, #tpu.memory_space<vmem>>, vector<1x32x8xf32>
    %58 = vector.shape_cast %57 : vector<1x32x8xf32> to vector<32x8xf32>
    %59 = vector.extract_strided_slice %51 {offsets = [0, 1], sizes = [8, 17], strides = [1, 1]} : vector<8x18xf32> to vector<8x17xf32>
    %cst_48 = arith.constant dense<0.000000e+00> : vector<32x17xf32>
    %60 = tpu.matmul %58, %59, %cst_48 {dimension_numbers = #tpu.dot_dimension_numbers<[1], [0], [0], [1], [0, 0, 1, 1], [], []>} : vector<32x8xf32>, vector<8x17xf32>, vector<32x17xf32> -> vector<32x17xf32>
    %61 = arith.addf %56, %60 : vector<32x17xf32>
    %c0_49 = arith.constant 0 : index
    %c1_50 = arith.constant 1 : index
    %c0_51 = arith.constant 0 : index
    %c0_52 = arith.constant 0 : index
    %62 = vector.load %arg4[%c0_49, %c1_50, %c0_51, %c0_52] : memref<1x8x32x17xf32, #tpu.memory_space<vmem>>, vector<1x1x32x17xf32>
    %63 = vector.shape_cast %62 : vector<1x1x32x17xf32> to vector<32x17xf32>
    %64 = vector.shape_cast %61 : vector<32x17xf32> to vector<1x1x32x17xf32>
    tpu.vector_store %arg4[%c0_49, %c1_50, %c0_51, %c0_52], %64 {strides = array<i32>} : memref<1x8x32x17xf32, #tpu.memory_space<vmem>>, vector<1x1x32x17xf32>,
    %c2_i32 = arith.constant 2 : i32
    %65 = arith.addi %0, %c2_i32 : i32
    %c0_i32_53 = arith.constant 0 : i32
    %66 = arith.addi %65, %c0_i32_53 : i32
    %c0_54 = arith.constant 0 : index
    %67 = arith.index_cast %66 : i32 to index
    %c0_55 = arith.constant 0 : index
    %c0_56 = arith.constant 0 : index
    %68 = vector.load %arg3[%c0_54, %67, %c0_55, %c0_56] : memref<1x25x8x18xf32, #tpu.memory_space<vmem>>, vector<1x1x8x18xf32>
    %69 = vector.shape_cast %68 : vector<1x1x8x18xf32> to vector<8x18xf32>
    %c0_57 = arith.constant 0 : index
    %c0_58 = arith.constant 0 : index
    %c0_59 = arith.constant 0 : index
    %70 = vector.load %arg2[%c0_57, %c0_58, %c0_59] : memref<4x32x8xf32, #tpu.memory_space<vmem>>, vector<1x32x8xf32>
    %71 = vector.shape_cast %70 : vector<1x32x8xf32> to vector<32x8xf32>
    %72 = vector.extract_strided_slice %69 {offsets = [0, 0], sizes = [8, 17], strides = [1, 1]} : vector<8x18xf32> to vector<8x17xf32>
    %cst_60 = arith.constant dense<0.000000e+00> : vector<32x17xf32>
    %73 = tpu.matmul %71, %72, %cst_60 {dimension_numbers = #tpu.dot_dimension_numbers<[1], [0], [0], [1], [0, 0, 1, 1], [], []>} : vector<32x8xf32>, vector<8x17xf32>, vector<32x17xf32> -> vector<32x17xf32>
    %c1_61 = arith.constant 1 : index
    %c0_62 = arith.constant 0 : index
    %c0_63 = arith.constant 0 : index
    %74 = vector.load %arg2[%c1_61, %c0_62, %c0_63] : memref<4x32x8xf32, #tpu.memory_space<vmem>>, vector<1x32x8xf32>
    %75 = vector.shape_cast %74 : vector<1x32x8xf32> to vector<32x8xf32>
    %76 = vector.extract_strided_slice %69 {offsets = [0, 1], sizes = [8, 17], strides = [1, 1]} : vector<8x18xf32> to vector<8x17xf32>
    %cst_64 = arith.constant dense<0.000000e+00> : vector<32x17xf32>
    %77 = tpu.matmul %75, %76, %cst_64 {dimension_numbers = #tpu.dot_dimension_numbers<[1], [0], [0], [1], [0, 0, 1, 1], [], []>} : vector<32x8xf32>, vector<8x17xf32>, vector<32x17xf32> -> vector<32x17xf32>
    %78 = arith.addf %73, %77 : vector<32x17xf32>
    %c2_i32_65 = arith.constant 2 : i32
    %79 = arith.addi %0, %c2_i32_65 : i32
    %c1_i32_66 = arith.constant 1 : i32
    %80 = arith.addi %79, %c1_i32_66 : i32
    %c0_67 = arith.constant 0 : index
    %81 = arith.index_cast %80 : i32 to index
    %c0_68 = arith.constant 0 : index
    %c0_69 = arith.constant 0 : index
    %82 = vector.load %arg3[%c0_67, %81, %c0_68, %c0_69] : memref<1x25x8x18xf32, #tpu.memory_space<vmem>>, vector<1x1x8x18xf32>
    %83 = vector.shape_cast %82 : vector<1x1x8x18xf32> to vector<8x18xf32>
    %c2_70 = arith.constant 2 : index
    %c0_71 = arith.constant 0 : index
    %c0_72 = arith.constant 0 : index
    %84 = vector.load %arg2[%c2_70, %c0_71, %c0_72] : memref<4x32x8xf32, #tpu.memory_space<vmem>>, vector<1x32x8xf32>
    %85 = vector.shape_cast %84 : vector<1x32x8xf32> to vector<32x8xf32>
    %86 = vector.extract_strided_slice %83 {offsets = [0, 0], sizes = [8, 17], strides = [1, 1]} : vector<8x18xf32> to vector<8x17xf32>
    %cst_73 = arith.constant dense<0.000000e+00> : vector<32x17xf32>
    %87 = tpu.matmul %85, %86, %cst_73 {dimension_numbers = #tpu.dot_dimension_numbers<[1], [0], [0], [1], [0, 0, 1, 1], [], []>} : vector<32x8xf32>, vector<8x17xf32>, vector<32x17xf32> -> vector<32x17xf32>
    %88 = arith.addf %78, %87 : vector<32x17xf32>
    %c3_74 = arith.constant 3 : index
    %c0_75 = arith.constant 0 : index
    %c0_76 = arith.constant 0 : index
    %89 = vector.load %arg2[%c3_74, %c0_75, %c0_76] : memref<4x32x8xf32, #tpu.memory_space<vmem>>, vector<1x32x8xf32>
    %90 = vector.shape_cast %89 : vector<1x32x8xf32> to vector<32x8xf32>
    %91 = vector.extract_strided_slice %83 {offsets = [0, 1], sizes = [8, 17], strides = [1, 1]} : vector<8x18xf32> to vector<8x17xf32>
    %cst_77 = arith.constant dense<0.000000e+00> : vector<32x17xf32>
    %92 = tpu.matmul %90, %91, %cst_77 {dimension_numbers = #tpu.dot_dimension_numbers<[1], [0], [0], [1], [0, 0, 1, 1], [], []>} : vector<32x8xf32>, vector<8x17xf32>, vector<32x17xf32> -> vector<32x17xf32>
    %93 = arith.addf %88, %92 : vector<32x17xf32>
    %c0_78 = arith.constant 0 : index
    %c2_79 = arith.constant 2 : index
    %c0_80 = arith.constant 0 : index
    %c0_81 = arith.constant 0 : index
    %94 = vector.load %arg4[%c0_78, %c2_79, %c0_80, %c0_81] : memref<1x8x32x17xf32, #tpu.memory_space<vmem>>, vector<1x1x32x17xf32>
    %95 = vector.shape_cast %94 : vector<1x1x32x17xf32> to vector<32x17xf32>
    %96 = vector.shape_cast %93 : vector<32x17xf32> to vector<1x1x32x17xf32>
    tpu.vector_store %arg4[%c0_78, %c2_79, %c0_80, %c0_81], %96 {strides = array<i32>} : memref<1x8x32x17xf32, #tpu.memory_space<vmem>>, vector<1x1x32x17xf32>,
    %c3_i32 = arith.constant 3 : i32
    %97 = arith.addi %0, %c3_i32 : i32
    %c0_i32_82 = arith.constant 0 : i32
    %98 = arith.addi %97, %c0_i32_82 : i32
    %c0_83 = arith.constant 0 : index
    %99 = arith.index_cast %98 : i32 to index
    %c0_84 = arith.constant 0 : index
    %c0_85 = arith.constant 0 : index
    %100 = vector.load %arg3[%c0_83, %99, %c0_84, %c0_85] : memref<1x25x8x18xf32, #tpu.memory_space<vmem>>, vector<1x1x8x18xf32>
    %101 = vector.shape_cast %100 : vector<1x1x8x18xf32> to vector<8x18xf32>
    %c0_86 = arith.constant 0 : index
    %c0_87 = arith.constant 0 : index
    %c0_88 = arith.constant 0 : index
    %102 = vector.load %arg2[%c0_86, %c0_87, %c0_88] : memref<4x32x8xf32, #tpu.memory_space<vmem>>, vector<1x32x8xf32>
    %103 = vector.shape_cast %102 : vector<1x32x8xf32> to vector<32x8xf32>
    %104 = vector.extract_strided_slice %101 {offsets = [0, 0], sizes = [8, 17], strides = [1, 1]} : vector<8x18xf32> to vector<8x17xf32>
    %cst_89 = arith.constant dense<0.000000e+00> : vector<32x17xf32>
    %105 = tpu.matmul %103, %104, %cst_89 {dimension_numbers = #tpu.dot_dimension_numbers<[1], [0], [0], [1], [0, 0, 1, 1], [], []>} : vector<32x8xf32>, vector<8x17xf32>, vector<32x17xf32> -> vector<32x17xf32>
    %c1_90 = arith.constant 1 : index
    %c0_91 = arith.constant 0 : index
    %c0_92 = arith.constant 0 : index
    %106 = vector.load %arg2[%c1_90, %c0_91, %c0_92] : memref<4x32x8xf32, #tpu.memory_space<vmem>>, vector<1x32x8xf32>
    %107 = vector.shape_cast %106 : vector<1x32x8xf32> to vector<32x8xf32>
    %108 = vector.extract_strided_slice %101 {offsets = [0, 1], sizes = [8, 17], strides = [1, 1]} : vector<8x18xf32> to vector<8x17xf32>
    %cst_93 = arith.constant dense<0.000000e+00> : vector<32x17xf32>
    %109 = tpu.matmul %107, %108, %cst_93 {dimension_numbers = #tpu.dot_dimension_numbers<[1], [0], [0], [1], [0, 0, 1, 1], [], []>} : vector<32x8xf32>, vector<8x17xf32>, vector<32x17xf32> -> vector<32x17xf32>
    %110 = arith.addf %105, %109 : vector<32x17xf32>
    %c3_i32_94 = arith.constant 3 : i32
    %111 = arith.addi %0, %c3_i32_94 : i32
    %c1_i32_95 = arith.constant 1 : i32
    %112 = arith.addi %111, %c1_i32_95 : i32
    %c0_96 = arith.constant 0 : index
    %113 = arith.index_cast %112 : i32 to index
    %c0_97 = arith.constant 0 : index
    %c0_98 = arith.constant 0 : index
    %114 = vector.load %arg3[%c0_96, %113, %c0_97, %c0_98] : memref<1x25x8x18xf32, #tpu.memory_space<vmem>>, vector<1x1x8x18xf32>
    %115 = vector.shape_cast %114 : vector<1x1x8x18xf32> to vector<8x18xf32>
    %c2_99 = arith.constant 2 : index
    %c0_100 = arith.constant 0 : index
    %c0_101 = arith.constant 0 : index
    %116 = vector.load %arg2[%c2_99, %c0_100, %c0_101] : memref<4x32x8xf32, #tpu.memory_space<vmem>>, vector<1x32x8xf32>
    %117 = vector.shape_cast %116 : vector<1x32x8xf32> to vector<32x8xf32>
    %118 = vector.extract_strided_slice %115 {offsets = [0, 0], sizes = [8, 17], strides = [1, 1]} : vector<8x18xf32> to vector<8x17xf32>
    %cst_102 = arith.constant dense<0.000000e+00> : vector<32x17xf32>
    %119 = tpu.matmul %117, %118, %cst_102 {dimension_numbers = #tpu.dot_dimension_numbers<[1], [0], [0], [1], [0, 0, 1, 1], [], []>} : vector<32x8xf32>, vector<8x17xf32>, vector<32x17xf32> -> vector<32x17xf32>
    %120 = arith.addf %110, %119 : vector<32x17xf32>
    %c3_103 = arith.constant 3 : index
    %c0_104 = arith.constant 0 : index
    %c0_105 = arith.constant 0 : index
    %121 = vector.load %arg2[%c3_103, %c0_104, %c0_105] : memref<4x32x8xf32, #tpu.memory_space<vmem>>, vector<1x32x8xf32>
    %122 = vector.shape_cast %121 : vector<1x32x8xf32> to vector<32x8xf32>
    %123 = vector.extract_strided_slice %115 {offsets = [0, 1], sizes = [8, 17], strides = [1, 1]} : vector<8x18xf32> to vector<8x17xf32>
    %cst_106 = arith.constant dense<0.000000e+00> : vector<32x17xf32>
    %124 = tpu.matmul %122, %123, %cst_106 {dimension_numbers = #tpu.dot_dimension_numbers<[1], [0], [0], [1], [0, 0, 1, 1], [], []>} : vector<32x8xf32>, vector<8x17xf32>, vector<32x17xf32> -> vector<32x17xf32>
    %125 = arith.addf %120, %124 : vector<32x17xf32>
    %c0_107 = arith.constant 0 : index
    %c3_108 = arith.constant 3 : index
    %c0_109 = arith.constant 0 : index
    %c0_110 = arith.constant 0 : index
    %126 = vector.load %arg4[%c0_107, %c3_108, %c0_109, %c0_110] : memref<1x8x32x17xf32, #tpu.memory_space<vmem>>, vector<1x1x32x17xf32>
    %127 = vector.shape_cast %126 : vector<1x1x32x17xf32> to vector<32x17xf32>
    %128 = vector.shape_cast %125 : vector<32x17xf32> to vector<1x1x32x17xf32>
    tpu.vector_store %arg4[%c0_107, %c3_108, %c0_109, %c0_110], %128 {strides = array<i32>} : memref<1x8x32x17xf32, #tpu.memory_space<vmem>>, vector<1x1x32x17xf32>,
    %c4_i32 = arith.constant 4 : i32
    %129 = arith.addi %0, %c4_i32 : i32
    %c0_i32_111 = arith.constant 0 : i32
    %130 = arith.addi %129, %c0_i32_111 : i32
    %c0_112 = arith.constant 0 : index
    %131 = arith.index_cast %130 : i32 to index
    %c0_113 = arith.constant 0 : index
    %c0_114 = arith.constant 0 : index
    %132 = vector.load %arg3[%c0_112, %131, %c0_113, %c0_114] : memref<1x25x8x18xf32, #tpu.memory_space<vmem>>, vector<1x1x8x18xf32>
    %133 = vector.shape_cast %132 : vector<1x1x8x18xf32> to vector<8x18xf32>
    %c0_115 = arith.constant 0 : index
    %c0_116 = arith.constant 0 : index
    %c0_117 = arith.constant 0 : index
    %134 = vector.load %arg2[%c0_115, %c0_116, %c0_117] : memref<4x32x8xf32, #tpu.memory_space<vmem>>, vector<1x32x8xf32>
    %135 = vector.shape_cast %134 : vector<1x32x8xf32> to vector<32x8xf32>
    %136 = vector.extract_strided_slice %133 {offsets = [0, 0], sizes = [8, 17], strides = [1, 1]} : vector<8x18xf32> to vector<8x17xf32>
    %cst_118 = arith.constant dense<0.000000e+00> : vector<32x17xf32>
    %137 = tpu.matmul %135, %136, %cst_118 {dimension_numbers = #tpu.dot_dimension_numbers<[1], [0], [0], [1], [0, 0, 1, 1], [], []>} : vector<32x8xf32>, vector<8x17xf32>, vector<32x17xf32> -> vector<32x17xf32>
    %c1_119 = arith.constant 1 : index
    %c0_120 = arith.constant 0 : index
    %c0_121 = arith.constant 0 : index
    %138 = vector.load %arg2[%c1_119, %c0_120, %c0_121] : memref<4x32x8xf32, #tpu.memory_space<vmem>>, vector<1x32x8xf32>
    %139 = vector.shape_cast %138 : vector<1x32x8xf32> to vector<32x8xf32>
    %140 = vector.extract_strided_slice %133 {offsets = [0, 1], sizes = [8, 17], strides = [1, 1]} : vector<8x18xf32> to vector<8x17xf32>
    %cst_122 = arith.constant dense<0.000000e+00> : vector<32x17xf32>
    %141 = tpu.matmul %139, %140, %cst_122 {dimension_numbers = #tpu.dot_dimension_numbers<[1], [0], [0], [1], [0, 0, 1, 1], [], []>} : vector<32x8xf32>, vector<8x17xf32>, vector<32x17xf32> -> vector<32x17xf32>
    %142 = arith.addf %137, %141 : vector<32x17xf32>
    %c4_i32_123 = arith.constant 4 : i32
    %143 = arith.addi %0, %c4_i32_123 : i32
    %c1_i32_124 = arith.constant 1 : i32
    %144 = arith.addi %143, %c1_i32_124 : i32
    %c0_125 = arith.constant 0 : index
    %145 = arith.index_cast %144 : i32 to index
    %c0_126 = arith.constant 0 : index
    %c0_127 = arith.constant 0 : index
    %146 = vector.load %arg3[%c0_125, %145, %c0_126, %c0_127] : memref<1x25x8x18xf32, #tpu.memory_space<vmem>>, vector<1x1x8x18xf32>
    %147 = vector.shape_cast %146 : vector<1x1x8x18xf32> to vector<8x18xf32>
    %c2_128 = arith.constant 2 : index
    %c0_129 = arith.constant 0 : index
    %c0_130 = arith.constant 0 : index
    %148 = vector.load %arg2[%c2_128, %c0_129, %c0_130] : memref<4x32x8xf32, #tpu.memory_space<vmem>>, vector<1x32x8xf32>
    %149 = vector.shape_cast %148 : vector<1x32x8xf32> to vector<32x8xf32>
    %150 = vector.extract_strided_slice %147 {offsets = [0, 0], sizes = [8, 17], strides = [1, 1]} : vector<8x18xf32> to vector<8x17xf32>
    %cst_131 = arith.constant dense<0.000000e+00> : vector<32x17xf32>
    %151 = tpu.matmul %149, %150, %cst_131 {dimension_numbers = #tpu.dot_dimension_numbers<[1], [0], [0], [1], [0, 0, 1, 1], [], []>} : vector<32x8xf32>, vector<8x17xf32>, vector<32x17xf32> -> vector<32x17xf32>
    %152 = arith.addf %142, %151 : vector<32x17xf32>
    %c3_132 = arith.constant 3 : index
    %c0_133 = arith.constant 0 : index
    %c0_134 = arith.constant 0 : index
    %153 = vector.load %arg2[%c3_132, %c0_133, %c0_134] : memref<4x32x8xf32, #tpu.memory_space<vmem>>, vector<1x32x8xf32>
    %154 = vector.shape_cast %153 : vector<1x32x8xf32> to vector<32x8xf32>
    %155 = vector.extract_strided_slice %147 {offsets = [0, 1], sizes = [8, 17], strides = [1, 1]} : vector<8x18xf32> to vector<8x17xf32>
    %cst_135 = arith.constant dense<0.000000e+00> : vector<32x17xf32>
    %156 = tpu.matmul %154, %155, %cst_135 {dimension_numbers = #tpu.dot_dimension_numbers<[1], [0], [0], [1], [0, 0, 1, 1], [], []>} : vector<32x8xf32>, vector<8x17xf32>, vector<32x17xf32> -> vector<32x17xf32>
    %157 = arith.addf %152, %156 : vector<32x17xf32>
    %c0_136 = arith.constant 0 : index
    %c4 = arith.constant 4 : index
    %c0_137 = arith.constant 0 : index
    %c0_138 = arith.constant 0 : index
    %158 = vector.load %arg4[%c0_136, %c4, %c0_137, %c0_138] : memref<1x8x32x17xf32, #tpu.memory_space<vmem>>, vector<1x1x32x17xf32>
    %159 = vector.shape_cast %158 : vector<1x1x32x17xf32> to vector<32x17xf32>
    %160 = vector.shape_cast %157 : vector<32x17xf32> to vector<1x1x32x17xf32>
    tpu.vector_store %arg4[%c0_136, %c4, %c0_137, %c0_138], %160 {strides = array<i32>} : memref<1x8x32x17xf32, #tpu.memory_space<vmem>>, vector<1x1x32x17xf32>,
    %c5_i32 = arith.constant 5 : i32
    %161 = arith.addi %0, %c5_i32 : i32
    %c0_i32_139 = arith.constant 0 : i32
    %162 = arith.addi %161, %c0_i32_139 : i32
    %c0_140 = arith.constant 0 : index
    %163 = arith.index_cast %162 : i32 to index
    %c0_141 = arith.constant 0 : index
    %c0_142 = arith.constant 0 : index
    %164 = vector.load %arg3[%c0_140, %163, %c0_141, %c0_142] : memref<1x25x8x18xf32, #tpu.memory_space<vmem>>, vector<1x1x8x18xf32>
    %165 = vector.shape_cast %164 : vector<1x1x8x18xf32> to vector<8x18xf32>
    %c0_143 = arith.constant 0 : index
    %c0_144 = arith.constant 0 : index
    %c0_145 = arith.constant 0 : index
    %166 = vector.load %arg2[%c0_143, %c0_144, %c0_145] : memref<4x32x8xf32, #tpu.memory_space<vmem>>, vector<1x32x8xf32>
    %167 = vector.shape_cast %166 : vector<1x32x8xf32> to vector<32x8xf32>
    %168 = vector.extract_strided_slice %165 {offsets = [0, 0], sizes = [8, 17], strides = [1, 1]} : vector<8x18xf32> to vector<8x17xf32>
    %cst_146 = arith.constant dense<0.000000e+00> : vector<32x17xf32>
    %169 = tpu.matmul %167, %168, %cst_146 {dimension_numbers = #tpu.dot_dimension_numbers<[1], [0], [0], [1], [0, 0, 1, 1], [], []>} : vector<32x8xf32>, vector<8x17xf32>, vector<32x17xf32> -> vector<32x17xf32>
    %c1_147 = arith.constant 1 : index
    %c0_148 = arith.constant 0 : index
    %c0_149 = arith.constant 0 : index
    %170 = vector.load %arg2[%c1_147, %c0_148, %c0_149] : memref<4x32x8xf32, #tpu.memory_space<vmem>>, vector<1x32x8xf32>
    %171 = vector.shape_cast %170 : vector<1x32x8xf32> to vector<32x8xf32>
    %172 = vector.extract_strided_slice %165 {offsets = [0, 1], sizes = [8, 17], strides = [1, 1]} : vector<8x18xf32> to vector<8x17xf32>
    %cst_150 = arith.constant dense<0.000000e+00> : vector<32x17xf32>
    %173 = tpu.matmul %171, %172, %cst_150 {dimension_numbers = #tpu.dot_dimension_numbers<[1], [0], [0], [1], [0, 0, 1, 1], [], []>} : vector<32x8xf32>, vector<8x17xf32>, vector<32x17xf32> -> vector<32x17xf32>
    %174 = arith.addf %169, %173 : vector<32x17xf32>
    %c5_i32_151 = arith.constant 5 : i32
    %175 = arith.addi %0, %c5_i32_151 : i32
    %c1_i32_152 = arith.constant 1 : i32
    %176 = arith.addi %175, %c1_i32_152 : i32
    %c0_153 = arith.constant 0 : index
    %177 = arith.index_cast %176 : i32 to index
    %c0_154 = arith.constant 0 : index
    %c0_155 = arith.constant 0 : index
    %178 = vector.load %arg3[%c0_153, %177, %c0_154, %c0_155] : memref<1x25x8x18xf32, #tpu.memory_space<vmem>>, vector<1x1x8x18xf32>
    %179 = vector.shape_cast %178 : vector<1x1x8x18xf32> to vector<8x18xf32>
    %c2_156 = arith.constant 2 : index
    %c0_157 = arith.constant 0 : index
    %c0_158 = arith.constant 0 : index
    %180 = vector.load %arg2[%c2_156, %c0_157, %c0_158] : memref<4x32x8xf32, #tpu.memory_space<vmem>>, vector<1x32x8xf32>
    %181 = vector.shape_cast %180 : vector<1x32x8xf32> to vector<32x8xf32>
    %182 = vector.extract_strided_slice %179 {offsets = [0, 0], sizes = [8, 17], strides = [1, 1]} : vector<8x18xf32> to vector<8x17xf32>
    %cst_159 = arith.constant dense<0.000000e+00> : vector<32x17xf32>
    %183 = tpu.matmul %181, %182, %cst_159 {dimension_numbers = #tpu.dot_dimension_numbers<[1], [0], [0], [1], [0, 0, 1, 1], [], []>} : vector<32x8xf32>, vector<8x17xf32>, vector<32x17xf32> -> vector<32x17xf32>
    %184 = arith.addf %174, %183 : vector<32x17xf32>
    %c3_160 = arith.constant 3 : index
    %c0_161 = arith.constant 0 : index
    %c0_162 = arith.constant 0 : index
    %185 = vector.load %arg2[%c3_160, %c0_161, %c0_162] : memref<4x32x8xf32, #tpu.memory_space<vmem>>, vector<1x32x8xf32>
    %186 = vector.shape_cast %185 : vector<1x32x8xf32> to vector<32x8xf32>
    %187 = vector.extract_strided_slice %179 {offsets = [0, 1], sizes = [8, 17], strides = [1, 1]} : vector<8x18xf32> to vector<8x17xf32>
    %cst_163 = arith.constant dense<0.000000e+00> : vector<32x17xf32>
    %188 = tpu.matmul %186, %187, %cst_163 {dimension_numbers = #tpu.dot_dimension_numbers<[1], [0], [0], [1], [0, 0, 1, 1], [], []>} : vector<32x8xf32>, vector<8x17xf32>, vector<32x17xf32> -> vector<32x17xf32>
    %189 = arith.addf %184, %188 : vector<32x17xf32>
    %c0_164 = arith.constant 0 : index
    %c5 = arith.constant 5 : index
    %c0_165 = arith.constant 0 : index
    %c0_166 = arith.constant 0 : index
    %190 = vector.load %arg4[%c0_164, %c5, %c0_165, %c0_166] : memref<1x8x32x17xf32, #tpu.memory_space<vmem>>, vector<1x1x32x17xf32>
    %191 = vector.shape_cast %190 : vector<1x1x32x17xf32> to vector<32x17xf32>
    %192 = vector.shape_cast %189 : vector<32x17xf32> to vector<1x1x32x17xf32>
    tpu.vector_store %arg4[%c0_164, %c5, %c0_165, %c0_166], %192 {strides = array<i32>} : memref<1x8x32x17xf32, #tpu.memory_space<vmem>>, vector<1x1x32x17xf32>,
    %c6_i32 = arith.constant 6 : i32
    %193 = arith.addi %0, %c6_i32 : i32
    %c0_i32_167 = arith.constant 0 : i32
    %194 = arith.addi %193, %c0_i32_167 : i32
    %c0_168 = arith.constant 0 : index
    %195 = arith.index_cast %194 : i32 to index
    %c0_169 = arith.constant 0 : index
    %c0_170 = arith.constant 0 : index
    %196 = vector.load %arg3[%c0_168, %195, %c0_169, %c0_170] : memref<1x25x8x18xf32, #tpu.memory_space<vmem>>, vector<1x1x8x18xf32>
    %197 = vector.shape_cast %196 : vector<1x1x8x18xf32> to vector<8x18xf32>
    %c0_171 = arith.constant 0 : index
    %c0_172 = arith.constant 0 : index
    %c0_173 = arith.constant 0 : index
    %198 = vector.load %arg2[%c0_171, %c0_172, %c0_173] : memref<4x32x8xf32, #tpu.memory_space<vmem>>, vector<1x32x8xf32>
    %199 = vector.shape_cast %198 : vector<1x32x8xf32> to vector<32x8xf32>
    %200 = vector.extract_strided_slice %197 {offsets = [0, 0], sizes = [8, 17], strides = [1, 1]} : vector<8x18xf32> to vector<8x17xf32>
    %cst_174 = arith.constant dense<0.000000e+00> : vector<32x17xf32>
    %201 = tpu.matmul %199, %200, %cst_174 {dimension_numbers = #tpu.dot_dimension_numbers<[1], [0], [0], [1], [0, 0, 1, 1], [], []>} : vector<32x8xf32>, vector<8x17xf32>, vector<32x17xf32> -> vector<32x17xf32>
    %c1_175 = arith.constant 1 : index
    %c0_176 = arith.constant 0 : index
    %c0_177 = arith.constant 0 : index
    %202 = vector.load %arg2[%c1_175, %c0_176, %c0_177] : memref<4x32x8xf32, #tpu.memory_space<vmem>>, vector<1x32x8xf32>
    %203 = vector.shape_cast %202 : vector<1x32x8xf32> to vector<32x8xf32>
    %204 = vector.extract_strided_slice %197 {offsets = [0, 1], sizes = [8, 17], strides = [1, 1]} : vector<8x18xf32> to vector<8x17xf32>
    %cst_178 = arith.constant dense<0.000000e+00> : vector<32x17xf32>
    %205 = tpu.matmul %203, %204, %cst_178 {dimension_numbers = #tpu.dot_dimension_numbers<[1], [0], [0], [1], [0, 0, 1, 1], [], []>} : vector<32x8xf32>, vector<8x17xf32>, vector<32x17xf32> -> vector<32x17xf32>
    %206 = arith.addf %201, %205 : vector<32x17xf32>
    %c6_i32_179 = arith.constant 6 : i32
    %207 = arith.addi %0, %c6_i32_179 : i32
    %c1_i32_180 = arith.constant 1 : i32
    %208 = arith.addi %207, %c1_i32_180 : i32
    %c0_181 = arith.constant 0 : index
    %209 = arith.index_cast %208 : i32 to index
    %c0_182 = arith.constant 0 : index
    %c0_183 = arith.constant 0 : index
    %210 = vector.load %arg3[%c0_181, %209, %c0_182, %c0_183] : memref<1x25x8x18xf32, #tpu.memory_space<vmem>>, vector<1x1x8x18xf32>
    %211 = vector.shape_cast %210 : vector<1x1x8x18xf32> to vector<8x18xf32>
    %c2_184 = arith.constant 2 : index
    %c0_185 = arith.constant 0 : index
    %c0_186 = arith.constant 0 : index
    %212 = vector.load %arg2[%c2_184, %c0_185, %c0_186] : memref<4x32x8xf32, #tpu.memory_space<vmem>>, vector<1x32x8xf32>
    %213 = vector.shape_cast %212 : vector<1x32x8xf32> to vector<32x8xf32>
    %214 = vector.extract_strided_slice %211 {offsets = [0, 0], sizes = [8, 17], strides = [1, 1]} : vector<8x18xf32> to vector<8x17xf32>
    %cst_187 = arith.constant dense<0.000000e+00> : vector<32x17xf32>
    %215 = tpu.matmul %213, %214, %cst_187 {dimension_numbers = #tpu.dot_dimension_numbers<[1], [0], [0], [1], [0, 0, 1, 1], [], []>} : vector<32x8xf32>, vector<8x17xf32>, vector<32x17xf32> -> vector<32x17xf32>
    %216 = arith.addf %206, %215 : vector<32x17xf32>
    %c3_188 = arith.constant 3 : index
    %c0_189 = arith.constant 0 : index
    %c0_190 = arith.constant 0 : index
    %217 = vector.load %arg2[%c3_188, %c0_189, %c0_190] : memref<4x32x8xf32, #tpu.memory_space<vmem>>, vector<1x32x8xf32>
    %218 = vector.shape_cast %217 : vector<1x32x8xf32> to vector<32x8xf32>
    %219 = vector.extract_strided_slice %211 {offsets = [0, 1], sizes = [8, 17], strides = [1, 1]} : vector<8x18xf32> to vector<8x17xf32>
    %cst_191 = arith.constant dense<0.000000e+00> : vector<32x17xf32>
    %220 = tpu.matmul %218, %219, %cst_191 {dimension_numbers = #tpu.dot_dimension_numbers<[1], [0], [0], [1], [0, 0, 1, 1], [], []>} : vector<32x8xf32>, vector<8x17xf32>, vector<32x17xf32> -> vector<32x17xf32>
    %221 = arith.addf %216, %220 : vector<32x17xf32>
    %c0_192 = arith.constant 0 : index
    %c6 = arith.constant 6 : index
    %c0_193 = arith.constant 0 : index
    %c0_194 = arith.constant 0 : index
    %222 = vector.load %arg4[%c0_192, %c6, %c0_193, %c0_194] : memref<1x8x32x17xf32, #tpu.memory_space<vmem>>, vector<1x1x32x17xf32>
    %223 = vector.shape_cast %222 : vector<1x1x32x17xf32> to vector<32x17xf32>
    %224 = vector.shape_cast %221 : vector<32x17xf32> to vector<1x1x32x17xf32>
    tpu.vector_store %arg4[%c0_192, %c6, %c0_193, %c0_194], %224 {strides = array<i32>} : memref<1x8x32x17xf32, #tpu.memory_space<vmem>>, vector<1x1x32x17xf32>,
    %c7_i32 = arith.constant 7 : i32
    %225 = arith.addi %0, %c7_i32 : i32
    %c0_i32_195 = arith.constant 0 : i32
    %226 = arith.addi %225, %c0_i32_195 : i32
    %c0_196 = arith.constant 0 : index
    %227 = arith.index_cast %226 : i32 to index
    %c0_197 = arith.constant 0 : index
    %c0_198 = arith.constant 0 : index
    %228 = vector.load %arg3[%c0_196, %227, %c0_197, %c0_198] : memref<1x25x8x18xf32, #tpu.memory_space<vmem>>, vector<1x1x8x18xf32>
    %229 = vector.shape_cast %228 : vector<1x1x8x18xf32> to vector<8x18xf32>
    %c0_199 = arith.constant 0 : index
    %c0_200 = arith.constant 0 : index
    %c0_201 = arith.constant 0 : index
    %230 = vector.load %arg2[%c0_199, %c0_200, %c0_201] : memref<4x32x8xf32, #tpu.memory_space<vmem>>, vector<1x32x8xf32>
    %231 = vector.shape_cast %230 : vector<1x32x8xf32> to vector<32x8xf32>
    %232 = vector.extract_strided_slice %229 {offsets = [0, 0], sizes = [8, 17], strides = [1, 1]} : vector<8x18xf32> to vector<8x17xf32>
    %cst_202 = arith.constant dense<0.000000e+00> : vector<32x17xf32>
    %233 = tpu.matmul %231, %232, %cst_202 {dimension_numbers = #tpu.dot_dimension_numbers<[1], [0], [0], [1], [0, 0, 1, 1], [], []>} : vector<32x8xf32>, vector<8x17xf32>, vector<32x17xf32> -> vector<32x17xf32>
    %c1_203 = arith.constant 1 : index
    %c0_204 = arith.constant 0 : index
    %c0_205 = arith.constant 0 : index
    %234 = vector.load %arg2[%c1_203, %c0_204, %c0_205] : memref<4x32x8xf32, #tpu.memory_space<vmem>>, vector<1x32x8xf32>
    %235 = vector.shape_cast %234 : vector<1x32x8xf32> to vector<32x8xf32>
    %236 = vector.extract_strided_slice %229 {offsets = [0, 1], sizes = [8, 17], strides = [1, 1]} : vector<8x18xf32> to vector<8x17xf32>
    %cst_206 = arith.constant dense<0.000000e+00> : vector<32x17xf32>
    %237 = tpu.matmul %235, %236, %cst_206 {dimension_numbers = #tpu.dot_dimension_numbers<[1], [0], [0], [1], [0, 0, 1, 1], [], []>} : vector<32x8xf32>, vector<8x17xf32>, vector<32x17xf32> -> vector<32x17xf32>
    %238 = arith.addf %233, %237 : vector<32x17xf32>
    %c7_i32_207 = arith.constant 7 : i32
    %239 = arith.addi %0, %c7_i32_207 : i32
    %c1_i32_208 = arith.constant 1 : i32
    %240 = arith.addi %239, %c1_i32_208 : i32
    %c0_209 = arith.constant 0 : index
    %241 = arith.index_cast %240 : i32 to index
    %c0_210 = arith.constant 0 : index
    %c0_211 = arith.constant 0 : index
    %242 = vector.load %arg3[%c0_209, %241, %c0_210, %c0_211] : memref<1x25x8x18xf32, #tpu.memory_space<vmem>>, vector<1x1x8x18xf32>
    %243 = vector.shape_cast %242 : vector<1x1x8x18xf32> to vector<8x18xf32>
    %c2_212 = arith.constant 2 : index
    %c0_213 = arith.constant 0 : index
    %c0_214 = arith.constant 0 : index
    %244 = vector.load %arg2[%c2_212, %c0_213, %c0_214] : memref<4x32x8xf32, #tpu.memory_space<vmem>>, vector<1x32x8xf32>
    %245 = vector.shape_cast %244 : vector<1x32x8xf32> to vector<32x8xf32>
    %246 = vector.extract_strided_slice %243 {offsets = [0, 0], sizes = [8, 17], strides = [1, 1]} : vector<8x18xf32> to vector<8x17xf32>
    %cst_215 = arith.constant dense<0.000000e+00> : vector<32x17xf32>
    %247 = tpu.matmul %245, %246, %cst_215 {dimension_numbers = #tpu.dot_dimension_numbers<[1], [0], [0], [1], [0, 0, 1, 1], [], []>} : vector<32x8xf32>, vector<8x17xf32>, vector<32x17xf32> -> vector<32x17xf32>
    %248 = arith.addf %238, %247 : vector<32x17xf32>
    %c3_216 = arith.constant 3 : index
    %c0_217 = arith.constant 0 : index
    %c0_218 = arith.constant 0 : index
    %249 = vector.load %arg2[%c3_216, %c0_217, %c0_218] : memref<4x32x8xf32, #tpu.memory_space<vmem>>, vector<1x32x8xf32>
    %250 = vector.shape_cast %249 : vector<1x32x8xf32> to vector<32x8xf32>
    %251 = vector.extract_strided_slice %243 {offsets = [0, 1], sizes = [8, 17], strides = [1, 1]} : vector<8x18xf32> to vector<8x17xf32>
    %cst_219 = arith.constant dense<0.000000e+00> : vector<32x17xf32>
    %252 = tpu.matmul %250, %251, %cst_219 {dimension_numbers = #tpu.dot_dimension_numbers<[1], [0], [0], [1], [0, 0, 1, 1], [], []>} : vector<32x8xf32>, vector<8x17xf32>, vector<32x17xf32> -> vector<32x17xf32>
    %253 = arith.addf %248, %252 : vector<32x17xf32>
    %c0_220 = arith.constant 0 : index
    %c7 = arith.constant 7 : index
    %c0_221 = arith.constant 0 : index
    %c0_222 = arith.constant 0 : index
    %254 = vector.load %arg4[%c0_220, %c7, %c0_221, %c0_222] : memref<1x8x32x17xf32, #tpu.memory_space<vmem>>, vector<1x1x32x17xf32>
    %255 = vector.shape_cast %254 : vector<1x1x32x17xf32> to vector<32x17xf32>
    %256 = vector.shape_cast %253 : vector<32x17xf32> to vector<1x1x32x17xf32>
    tpu.vector_store %arg4[%c0_220, %c7, %c0_221, %c0_222], %256 {strides = array<i32>} : memref<1x8x32x17xf32, #tpu.memory_space<vmem>>, vector<1x1x32x17xf32>,
    return
  }
  func.func @transform_0(%arg0: i32, %arg1: i32) -> (i32, i32, i32) {
    %c0_i32 = arith.constant 0 : i32
    %c0_i32_0 = arith.constant 0 : i32
    %c0_i32_1 = arith.constant 0 : i32
    %c0_i32_2 = arith.constant 0 : i32
    return %c0_i32, %c0_i32_0, %c0_i32_1 : i32, i32, i32
  }
  func.func @transform_1(%arg0: i32, %arg1: i32) -> (i32, i32, i32, i32) {
    %c0_i32 = arith.constant 0 : i32
    %c0_i32_0 = arith.constant 0 : i32
    %c0_i32_1 = arith.constant 0 : i32
    %c0_i32_2 = arith.constant 0 : i32
    return %arg0, %c0_i32, %c0_i32_0, %c0_i32_1 : i32, i32, i32, i32
  }
  func.func @transform_2(%arg0: i32, %arg1: i32) -> (i32, i32, i32, i32) {
    %c0_i32 = arith.constant 0 : i32
    %c0_i32_0 = arith.constant 0 : i32
    %c0_i32_1 = arith.constant 0 : i32
    return %arg0, %arg1, %c0_i32, %c0_i32_0 : i32, i32, i32, i32
  }
}

</mosaic_0001>

<llo_original>
// kernel: conv_transpose2d.1
$region0: #{conv_transpose2d.1}
  #allocation0 [shape = 'u32[]', space=smem, size = 0x4, offset = 0x4, fixed_abs, tag = 'smem constant byte address 0x4 - core index']
  #allocation1 [shape = 'u32[72,128]{1,0:T(1,128)}', space=vmem, size = 0x9000, scoped, tag = 'internal scratch']
  %s0 = inlined_call_operand.vmem [shape: f32[4,32,8], index: 0, kind: input, shape index: {}]
  %s1 = inlined_call_operand.vmem [shape: f32[2,25,8,18], index: 1, kind: input, shape index: {}]
  %s2 = inlined_call_operand.vmem [shape: f32[2,24,32,17], index: 2, kind: output, shape index: {}]
  %s3 = sld [smem:[#allocation0]]
  $region41: #{conv_transpose2d.1} parent=0
    _
  %s5 = ssub.s32 1, %s3
  %s6 = scalar_select 0, %s5, %s3
  loop: start=0, step=1, limit=8
  $region2: #{conv_transpose2d.1} parent=0 // loop_pre_header
    _
  $region3: #{conv_transpose2d.1} parent=0 // loop_header
    %s8 = sphi 0, %s12
    %p9 = scmp.ge.s32.totalorder %s8, 8
    %s15 = sphi 0, %s27
    %s16 = sphi 0, %s23
    %s17 = sphi 0, %s15
    %s18 = sphi 0, %s16
    %s19 = sphi 0, %s17
    %s20 = sphi 0, %s18
    %s28 = sphi 0, %s28
    %s30 = sphi 0, %s28
    %s31 = sphi 0, %s30
    %s45 = sphi 0, %s31
    %s51 = sphi 0, %s53
    %s54 = sphi 0, %s51
    %s55 = sphi 0, %s54
    %s71 = sphi 0, %s55
    %s79 = sphi 0, %s81
    %s82 = sphi 0, %s79
    %s83 = sphi 0, %s82
    %s99 = sphi 0, %s83
  $region4: #{conv_transpose2d.1} parent=0 // loop_header_branch
    %11 = sbr.rel (%p9) target = $region8
  $region5: #{conv_transpose2d.1} parent=0 // loop_body
    %s13 = ssub.s32 %s8, 1
    %s14 = ssub.s32 %s8, 2
    %s21 = sadd.s32 1, %s16
    %p22 = scmp.ge.s32.totalorder %s21, 3
    %s23 = scalar_select %p22, 0, %s21
    %s24 = sadd.s32 1, %s15
    %s25 = scalar_select %p22, %s24, %s15
    %p26 = scmp.ge.s32.totalorder %s25, 2
    %s27 = scalar_select %p26, 0, %s25
    %s29 = sadd.s32 %s28, 1
    %p32 = scmp.eq.s32.totalorder %s8, 5
    %p33 = scmp.ne.s32.totalorder %s28, %s30
    %p34 = scmp.eq.s32.totalorder %s8, 0
    %p35 = por %p33, %p34
    %p36 = scmp.ne.s32.totalorder %s28, %s30
    %p37 = scmp.eq.s32.totalorder %s13, 5
    %p38 = por %p36, %p37
    %p39 = scmp.ne.s32.totalorder %s30, %s31
    %p40 = scmp.eq.s32.totalorder %s13, 0
    %p41 = por %p39, %p40
    %p42 = scmp.ne.s32.totalorder %s30, %s31
    %p43 = scmp.eq.s32.totalorder %s14, 5
    %p44 = por %p42, %p43
    %p46 = scmp.ne.s32.totalorder %s31, %s45
    %p47 = scmp.eq.s32.totalorder %s14, 0
    %p48 = por %p46, %p47
    %s49 = ssub.s32 %s15, %s27
    %p50 = scmp.eq.s32.totalorder %s49, 0
    %s52 = sadd.s32 %s51, 1
    %s53 = scalar_select %p50, %s51, %s52
    %p56 = pneg %p50
    %p57 = scmp.eq.s32.totalorder %s8, 5
    %p58 = por %p56, %p57
    %p59 = scmp.ne.s32.totalorder %s51, %s54
    %p60 = scmp.eq.s32.totalorder %s8, 0
    %p61 = por %p59, %p60
    %p62 = scmp.ne.s32.totalorder %s51, %s54
    %p63 = scmp.eq.s32.totalorder %s13, 5
    %p64 = por %p62, %p63
    %p65 = scmp.ne.s32.totalorder %s54, %s55
    %p66 = scmp.eq.s32.totalorder %s13, 0
    %p67 = por %p65, %p66
    %p68 = scmp.ne.s32.totalorder %s54, %s55
    %p69 = scmp.eq.s32.totalorder %s14, 5
    %p70 = por %p68, %p69
    %p72 = scmp.ne.s32.totalorder %s55, %s71
    %p73 = scmp.eq.s32.totalorder %s14, 0
    %p74 = por %p72, %p73
    %s75 = ssub.s32 %s15, %s27
    %s76 = ssub.s32 %s16, %s23
    %s77 = sor.u32 %s75, %s76
    %p78 = scmp.eq.s32.totalorder %s77, 0
    %s80 = sadd.s32 %s79, 1
    %s81 = scalar_select %p78, %s79, %s80
    %p84 = pneg %p78
    %p85 = scmp.eq.s32.totalorder %s8, 5
    %p86 = por %p84, %p85
    %p87 = scmp.ne.s32.totalorder %s79, %s82
    %p88 = scmp.eq.s32.totalorder %s8, 0
    %p89 = por %p87, %p88
    %p90 = scmp.ne.s32.totalorder %s79, %s82
    %p91 = scmp.eq.s32.totalorder %s13, 5
    %p92 = por %p90, %p91
    %p93 = scmp.ne.s32.totalorder %s82, %s83
    %p94 = scmp.eq.s32.totalorder %s13, 0
    %p95 = por %p93, %p94
    %p96 = scmp.ne.s32.totalorder %s82, %s83
    %p97 = scmp.eq.s32.totalorder %s14, 5
    %p98 = por %p96, %p97
    %p100 = scmp.ne.s32.totalorder %s83, %s99
    %p101 = scmp.eq.s32.totalorder %s14, 0
    %p102 = por %p100, %p101
    %p103 = scmp.le.s32.totalorder 1, %s8
    %p104 = scmp.lt.s32.totalorder %s8, 7
    %p105 = pnand %p103, %p104
    %p106 = pneg %p105
    // Predicated region
    $region9: #{conv_transpose2d.1} parent=5 // pred_check
      _
    $region10: #{conv_transpose2d.1} parent=5 // pred_check_branch
      %108 = sbr.rel (%p105) target = $region12
    $region11: #{conv_transpose2d.1} parent=5 // pred_region
      %s109 = ssub.s32 %s8, 1
      // Predicated region
      $region13: #{conv_transpose2d.1} parent=11 // pred_check
        %p110 = pneg %p41
      $region14: #{conv_transpose2d.1} parent=11 // pred_check_branch
        %112 = sbr.rel (%p110) target = $region16
      $region15: #{conv_transpose2d.1} parent=11 // pred_region
        _
      $region16: #{conv_transpose2d.1} parent=11 // pred_fallthru
        _
    $region12: #{conv_transpose2d.1} parent=5 // pred_fallthru
      _
    %p113 = scmp.lt.s32.totalorder %s8, 6
    // Predicated region
    $region17: #{conv_transpose2d.1} parent=5 // pred_check
      %p114 = pneg %p113
    $region18: #{conv_transpose2d.1} parent=5 // pred_check_branch
      %116 = sbr.rel (%p114) target = $region20
    $region19: #{conv_transpose2d.1} parent=5 // pred_region
      // Predicated region
      $region21: #{conv_transpose2d.1} parent=19 // pred_check
        %p117 = pneg %p61
      $region22: #{conv_transpose2d.1} parent=19 // pred_check_branch
        %119 = sbr.rel (%p117) target = $region24
      $region23: #{conv_transpose2d.1} parent=19 // pred_region
        %p120 = scmp.lt.s32.totalorder %s15, 1
        %s121 = scalar_select %p120, %s15, 1
        %s122 = smul.addr %s121, 25
        %s123 = smul.addr %s122, 8
        %s124 = scalar_lea.vmem %s1, %s123
      $region24: #{conv_transpose2d.1} parent=19 // pred_fallthru
        _
    $region20: #{conv_transpose2d.1} parent=5 // pred_fallthru
      _
    %p125 = scmp.le.s32.totalorder 1, %s8
    %p126 = scmp.lt.s32.totalorder %s8, 7
    %p127 = pnand %p125, %p126
    %p128 = pneg %p127
    // Predicated region
    $region25: #{conv_transpose2d.1} parent=5 // pred_check
      _
    $region26: #{conv_transpose2d.1} parent=5 // pred_check_branch
      %130 = sbr.rel (%p127) target = $region28
    $region27: #{conv_transpose2d.1} parent=5 // pred_region
      %s131 = ssub.s32 %s8, 1
      %p132 = pneg %p41
      %p133 = pneg %p38
      %p134 = scmp.lt.s32.totalorder %s17, 1
      %s135 = scalar_select %p134, %s17, 1
      %s136 = smul.addr %s135, 25
      %s137 = smul.addr %s136, 8
      %s138 = scalar_lea.vmem %s1, %s137
      %p139 = pneg %p67
      %p140 = pneg %p64
      %p141 = pneg %p95
      %p142 = pneg %p92
      %s143 = smul.u32 8, %s18
      %p144 = scmp.lt.s32.totalorder %s17, 1
      %s145 = scalar_select %p144, %s17, 1
      %p146 = scmp.lt.s32.totalorder %s143, 23
      %s147 = scalar_select %p146, %s143, 23
      %s148 = smul.addr %s147, 4
      %s149 = smul.addr %s145, 96
      %s150 = sadd.s32 %s148, %s149
      %s151 = smul.addr %s150, 8
      %s152 = scalar_lea.vmem %s2, %s151
      %p153 = scmp.lt.s32.totalorder %s17, 1
      %s154 = scalar_select %p153, %s17, 1
      %s155 = smul.addr %s154, 25
      %s156 = smul.addr %s155, 8
      %s157 = scalar_lea.vmem %s1, %s156
      %s158 = smul.u32 8, %s18
      %p159 = scmp.lt.s32.totalorder %s17, 1
      %s160 = scalar_select %p159, %s17, 1
      %p161 = scmp.lt.s32.totalorder %s158, 23
      %s162 = scalar_select %p161, %s158, 23
      %s163 = smul.addr %s162, 4
      %s164 = smul.addr %s160, 96
      %s165 = sadd.s32 %s163, %s164
      %s166 = smul.addr %s165, 8
      %s167 = scalar_lea.vmem %s2, %s166
      %s168 = smul.u32 8, %s18
      %s169 = smul.u32 %s18, 8
      %s170 = smul.u32 %s169, 8
      %s171 = scalar_lea.vmem %s157, %s170
      %v172 = vld [vmem:[%s171] sm:$0xff]
      %v173 = vld [vmem:[%s0] sm:$0xff]
      %v174 = vld [vmem:[%s0 + $0x8] sm:$0xff]
      %v175 = vld [vmem:[%s0 + $0x10] sm:$0xff]
      %v176 = vld [vmem:[%s0 + $0x18] sm:$0xff]
      %s177 = scalar_lea.vmem %s0, 32
      %v178 = vld [vmem:[%s177] sm:$0xff]
      %v179 = vld [vmem:[%s177 + $0x8] sm:$0xff]
      %v180 = vld [vmem:[%s177 + $0x10] sm:$0xff]
      %v181 = vld [vmem:[%s177 + $0x18] sm:$0xff]
      %183 = vrot.lane.b32.xlu0 %v172, 127
      %v184 = vpop.permute.xlu0 %183
      %vm186 = vcmask 64512
      %v188 = vsel %vm186, %v178, 0
      %v191 = vsel %vm186, %v179, 0
      %v194 = vsel %vm186, %v180, 0
      %v197 = vsel %vm186, %v181, 0
      %199 = vmatpush.msra.mxu0 0.0
      %200 = vmatpush.msra.mxu0 0.0
      %201 = vmatpush.msra.mxu0 0.0
      %202 = vmatpush.msra.mxu0 0.0
      %203 = vmatpush.msra.mxu0 0.0
      %204 = vmatpush.msra.mxu0 0.0
      %205 = vmatpush.msra.mxu0 0.0
      %206 = vmatpush.msra.mxu0 0.0
      %207 = vmatpush.msra.mxu0 0.0
      %208 = vmatpush.msra.mxu0 0.0
      %209 = vmatpush.msra.mxu0 0.0
      %210 = vmatpush.msra.mxu0 0.0
      %211 = vmatpush.msra.mxu0 0.0
      %212 = vmatpush.msra.mxu0 0.0
      %213 = vmatpush.msra.mxu0 0.0
      %214 = vmatpush.msra.mxu0 %v184
      %215 = vmatmul.f32.gmra.mxu0 %v188
      %v216 = vpop.f32.mrf.mxu0
      %v217 = vadd.f32 0.0, %v216
      %218 = vmatmul.f32.gmra.mxu0 %v191
      %v219 = vpop.f32.mrf.mxu0
      %v220 = vadd.f32 0.0, %v219
      %221 = vmatmul.f32.gmra.mxu0 %v194
      %v222 = vpop.f32.mrf.mxu0
      %v223 = vadd.f32 0.0, %v222
      %224 = vmatmul.f32.gmra.mxu0 %v197
      %v225 = vpop.f32.mrf.mxu0
      %v226 = vadd.f32 0.0, %v225
      %227 = vdwg.mxu0
      %v229 = vsel %vm186, %v173, 0
      %v232 = vsel %vm186, %v174, 0
      %v235 = vsel %vm186, %v175, 0
      %v238 = vsel %vm186, %v176, 0
      %240 = vmatpush.msra.mxu0 0.0
      %241 = vmatpush.msra.mxu0 0.0
      %242 = vmatpush.msra.mxu0 0.0
      %243 = vmatpush.msra.mxu0 0.0
      %244 = vmatpush.msra.mxu0 0.0
      %245 = vmatpush.msra.mxu0 0.0
      %246 = vmatpush.msra.mxu0 0.0
      %247 = vmatpush.msra.mxu0 0.0
      %248 = vmatpush.msra.mxu0 0.0
      %249 = vmatpush.msra.mxu0 0.0
      %250 = vmatpush.msra.mxu0 0.0
      %251 = vmatpush.msra.mxu0 0.0
      %252 = vmatpush.msra.mxu0 0.0
      %253 = vmatpush.msra.mxu0 0.0
      %254 = vmatpush.msra.mxu0 0.0
      %255 = vmatpush.msra.mxu0 %v172
      %256 = vmatmul.f32.gmra.mxu0 %v229
      %v257 = vpop.f32.mrf.mxu0
      %v258 = vadd.f32 %v217, %v257
      %259 = vmatmul.f32.gmra.mxu0 %v232
      %v260 = vpop.f32.mrf.mxu0
      %v261 = vadd.f32 %v220, %v260
      %262 = vmatmul.f32.gmra.mxu0 %v235
      %v263 = vpop.f32.mrf.mxu0
      %v264 = vadd.f32 %v223, %v263
      %265 = vmatmul.f32.gmra.mxu0 %v238
      %v266 = vpop.f32.mrf.mxu0
      %v267 = vadd.f32 %v226, %v266
      %268 = vdwg.mxu0
      %s269 = sadd.s32 %s169, 1
      %s270 = smul.u32 %s269, 8
      %s271 = scalar_lea.vmem %s157, %s270
      %v272 = vld [vmem:[%s271] sm:$0xff]
      %s273 = scalar_lea.vmem %s0, 64
      %v274 = vld [vmem:[%s273] sm:$0xff]
      %v275 = vld [vmem:[%s273 + $0x8] sm:$0xff]
      %v276 = vld [vmem:[%s273 + $0x10] sm:$0xff]
      %v277 = vld [vmem:[%s273 + $0x18] sm:$0xff]
      %v279 = vsel %vm186, %v274, 0
      %v282 = vsel %vm186, %v275, 0
      %v285 = vsel %vm186, %v276, 0
      %v288 = vsel %vm186, %v277, 0
      %290 = vmatpush.msra.mxu0 0.0
      %291 = vmatpush.msra.mxu0 0.0
      %292 = vmatpush.msra.mxu0 0.0
      %293 = vmatpush.msra.mxu0 0.0
      %294 = vmatpush.msra.mxu0 0.0
      %295 = vmatpush.msra.mxu0 0.0
      %296 = vmatpush.msra.mxu0 0.0
      %297 = vmatpush.msra.mxu0 0.0
      %298 = vmatpush.msra.mxu0 0.0
      %299 = vmatpush.msra.mxu0 0.0
      %300 = vmatpush.msra.mxu0 0.0
      %301 = vmatpush.msra.mxu0 0.0
      %302 = vmatpush.msra.mxu0 0.0
      %303 = vmatpush.msra.mxu0 0.0
      %304 = vmatpush.msra.mxu0 0.0
      %305 = vmatpush.msra.mxu0 %v272
      %306 = vmatmul.f32.gmra.mxu0 %v279
      %v307 = vpop.f32.mrf.mxu0
      %v308 = vadd.f32 0.0, %v307
      %309 = vmatmul.f32.gmra.mxu0 %v282
      %v310 = vpop.f32.mrf.mxu0
      %v311 = vadd.f32 0.0, %v310
      %312 = vmatmul.f32.gmra.mxu0 %v285
      %v313 = vpop.f32.mrf.mxu0
      %v314 = vadd.f32 0.0, %v313
      %315 = vmatmul.f32.gmra.mxu0 %v288
      %v316 = vpop.f32.mrf.mxu0
      %v317 = vadd.f32 0.0, %v316
      %318 = vdwg.mxu0
      %v319 = vadd.f32 %v258, %v308
      %v320 = vadd.f32 %v261, %v311
      %v321 = vadd.f32 %v264, %v314
      %v322 = vadd.f32 %v267, %v317
      %s323 = scalar_lea.vmem %s0, 96
      %v324 = vld [vmem:[%s323] sm:$0xff]
      %v325 = vld [vmem:[%s323 + $0x8] sm:$0xff]
      %v326 = vld [vmem:[%s323 + $0x10] sm:$0xff]
      %v327 = vld [vmem:[%s323 + $0x18] sm:$0xff]
      %329 = vrot.lane.b32.xlu0 %v272, 127
      %v330 = vpop.permute.xlu0 %329
      %v333 = vsel %vm186, %v324, 0
      %v336 = vsel %vm186, %v325, 0
      %v339 = vsel %vm186, %v326, 0
      %v342 = vsel %vm186, %v327, 0
      %344 = vmatpush.msra.mxu0 0.0
      %345 = vmatpush.msra.mxu0 0.0
      %346 = vmatpush.msra.mxu0 0.0
      %347 = vmatpush.msra.mxu0 0.0
      %348 = vmatpush.msra.mxu0 0.0
      %349 = vmatpush.msra.mxu0 0.0
      %350 = vmatpush.msra.mxu0 0.0
      %351 = vmatpush.msra.mxu0 0.0
      %352 = vmatpush.msra.mxu0 0.0
      %353 = vmatpush.msra.mxu0 0.0
      %354 = vmatpush.msra.mxu0 0.0
      %355 = vmatpush.msra.mxu0 0.0
      %356 = vmatpush.msra.mxu0 0.0
      %357 = vmatpush.msra.mxu0 0.0
      %358 = vmatpush.msra.mxu0 0.0
      %359 = vmatpush.msra.mxu0 %v330
      %360 = vmatmul.f32.gmra.mxu0 %v333
      %v361 = vpop.f32.mrf.mxu0
      %v362 = vadd.f32 0.0, %v361
      %363 = vmatmul.f32.gmra.mxu0 %v336
      %v364 = vpop.f32.mrf.mxu0
      %v365 = vadd.f32 0.0, %v364
      %366 = vmatmul.f32.gmra.mxu0 %v339
      %v367 = vpop.f32.mrf.mxu0
      %v368 = vadd.f32 0.0, %v367
      %369 = vmatmul.f32.gmra.mxu0 %v342
      %v370 = vpop.f32.mrf.mxu0
      %v371 = vadd.f32 0.0, %v370
      %372 = vdwg.mxu0
      %v373 = vadd.f32 %v319, %v362
      %v374 = vadd.f32 %v320, %v365
      %v375 = vadd.f32 %v321, %v368
      %v376 = vadd.f32 %v322, %v371
      %vm377 = vcmask 138240
      %378 = vst.msk [vmem:[%s167] sm:$0xff] %vm377, %v373
      %379 = vst.msk [vmem:[%s167 + $0x8] sm:$0xff] %vm377, %v374
      %380 = vst.msk [vmem:[%s167 + $0x10] sm:$0xff] %vm377, %v375
      %381 = vst.msk [vmem:[%s167 + $0x18] sm:$0xff] %vm377, %v376
      %v382 = vld [vmem:[%s271] sm:$0xff]
      %v383 = vld [vmem:[%s0] sm:$0xff]
      %v384 = vld [vmem:[%s0 + $0x8] sm:$0xff]
      %v385 = vld [vmem:[%s0 + $0x10] sm:$0xff]
      %v386 = vld [vmem:[%s0 + $0x18] sm:$0xff]
      %v387 = vld [vmem:[%s177] sm:$0xff]
      %v388 = vld [vmem:[%s177 + $0x8] sm:$0xff]
      %v389 = vld [vmem:[%s177 + $0x10] sm:$0xff]
      %v390 = vld [vmem:[%s177 + $0x18] sm:$0xff]
      %392 = vrot.lane.b32.xlu0 %v382, 127
      %v393 = vpop.permute.xlu0 %392
      %v396 = vsel %vm186, %v387, 0
      %v399 = vsel %vm186, %v388, 0
      %v402 = vsel %vm186, %v389, 0
      %v405 = vsel %vm186, %v390, 0
      %407 = vmatpush.msra.mxu0 0.0
      %408 = vmatpush.msra.mxu0 0.0
      %409 = vmatpush.msra.mxu0 0.0
      %410 = vmatpush.msra.mxu0 0.0
      %411 = vmatpush.msra.mxu0 0.0
      %412 = vmatpush.msra.mxu0 0.0
      %413 = vmatpush.msra.mxu0 0.0
      %414 = vmatpush.msra.mxu0 0.0
      %415 = vmatpush.msra.mxu0 0.0
      %416 = vmatpush.msra.mxu0 0.0
      %417 = vmatpush.msra.mxu0 0.0
      %418 = vmatpush.msra.mxu0 0.0
      %419 = vmatpush.msra.mxu0 0.0
      %420 = vmatpush.msra.mxu0 0.0
      %421 = vmatpush.msra.mxu0 0.0
      %422 = vmatpush.msra.mxu0 %v393
      %423 = vmatmul.f32.gmra.mxu0 %v396
      %v424 = vpop.f32.mrf.mxu0
      %v425 = vadd.f32 0.0, %v424
      %426 = vmatmul.f32.gmra.mxu0 %v399
      %v427 = vpop.f32.mrf.mxu0
      %v428 = vadd.f32 0.0, %v427
      %429 = vmatmul.f32.gmra.mxu0 %v402
      %v430 = vpop.f32.mrf.mxu0
      %v431 = vadd.f32 0.0, %v430
      %432 = vmatmul.f32.gmra.mxu0 %v405
      %v433 = vpop.f32.mrf.mxu0
      %v434 = vadd.f32 0.0, %v433
      %435 = vdwg.mxu0
      %v437 = vsel %vm186, %v383, 0
      %v440 = vsel %vm186, %v384, 0
      %v443 = vsel %vm186, %v385, 0
      %v446 = vsel %vm186, %v386, 0
      %448 = vmatpush.msra.mxu0 0.0
      %449 = vmatpush.msra.mxu0 0.0
      %450 = vmatpush.msra.mxu0 0.0
      %451 = vmatpush.msra.mxu0 0.0
      %452 = vmatpush.msra.mxu0 0.0
      %453 = vmatpush.msra.mxu0 0.0
      %454 = vmatpush.msra.mxu0 0.0
      %455 = vmatpush.msra.mxu0 0.0
      %456 = vmatpush.msra.mxu0 0.0
      %457 = vmatpush.msra.mxu0 0.0
      %458 = vmatpush.msra.mxu0 0.0
      %459 = vmatpush.msra.mxu0 0.0
      %460 = vmatpush.msra.mxu0 0.0
      %461 = vmatpush.msra.mxu0 0.0
      %462 = vmatpush.msra.mxu0 0.0
      %463 = vmatpush.msra.mxu0 %v382
      %464 = vmatmul.f32.gmra.mxu0 %v437
      %v465 = vpop.f32.mrf.mxu0
      %v466 = vadd.f32 %v425, %v465
      %467 = vmatmul.f32.gmra.mxu0 %v440
      %v468 = vpop.f32.mrf.mxu0
      %v469 = vadd.f32 %v428, %v468
      %470 = vmatmul.f32.gmra.mxu0 %v443
      %v471 = vpop.f32.mrf.mxu0
      %v472 = vadd.f32 %v431, %v471
      %473 = vmatmul.f32.gmra.mxu0 %v446
      %v474 = vpop.f32.mrf.mxu0
      %v475 = vadd.f32 %v434, %v474
      %476 = vdwg.mxu0
      %s477 = sadd.s32 %s169, 2
      %s478 = smul.u32 %s477, 8
      %s479 = scalar_lea.vmem %s157, %s478
      %v480 = vld [vmem:[%s479] sm:$0xff]
      %v481 = vld [vmem:[%s273] sm:$0xff]
      %v482 = vld [vmem:[%s273 + $0x8] sm:$0xff]
      %v483 = vld [vmem:[%s273 + $0x10] sm:$0xff]
      %v484 = vld [vmem:[%s273 + $0x18] sm:$0xff]
      %v486 = vsel %vm186, %v481, 0
      %v489 = vsel %vm186, %v482, 0
      %v492 = vsel %vm186, %v483, 0
      %v495 = vsel %vm186, %v484, 0
      %497 = vmatpush.msra.mxu0 0.0
      %498 = vmatpush.msra.mxu0 0.0
      %499 = vmatpush.msra.mxu0 0.0
      %500 = vmatpush.msra.mxu0 0.0
      %501 = vmatpush.msra.mxu0 0.0
      %502 = vmatpush.msra.mxu0 0.0
      %503 = vmatpush.msra.mxu0 0.0
      %504 = vmatpush.msra.mxu0 0.0
      %505 = vmatpush.msra.mxu0 0.0
      %506 = vmatpush.msra.mxu0 0.0
      %507 = vmatpush.msra.mxu0 0.0
      %508 = vmatpush.msra.mxu0 0.0
      %509 = vmatpush.msra.mxu0 0.0
      %510 = vmatpush.msra.mxu0 0.0
      %511 = vmatpush.msra.mxu0 0.0
      %512 = vmatpush.msra.mxu0 %v480
      %513 = vmatmul.f32.gmra.mxu0 %v486
      %v514 = vpop.f32.mrf.mxu0
      %v515 = vadd.f32 0.0, %v514
      %516 = vmatmul.f32.gmra.mxu0 %v489
      %v517 = vpop.f32.mrf.mxu0
      %v518 = vadd.f32 0.0, %v517
      %519 = vmatmul.f32.gmra.mxu0 %v492
      %v520 = vpop.f32.mrf.mxu0
      %v521 = vadd.f32 0.0, %v520
      %522 = vmatmul.f32.gmra.mxu0 %v495
      %v523 = vpop.f32.mrf.mxu0
      %v524 = vadd.f32 0.0, %v523
      %525 = vdwg.mxu0
      %v526 = vadd.f32 %v466, %v515
      %v527 = vadd.f32 %v469, %v518
      %v528 = vadd.f32 %v472, %v521
      %v529 = vadd.f32 %v475, %v524
      %v530 = vld [vmem:[%s323] sm:$0xff]
      %v531 = vld [vmem:[%s323 + $0x8] sm:$0xff]
      %v532 = vld [vmem:[%s323 + $0x10] sm:$0xff]
      %v533 = vld [vmem:[%s323 + $0x18] sm:$0xff]
      %535 = vrot.lane.b32.xlu0 %v480, 127
      %v536 = vpop.permute.xlu0 %535
      %v539 = vsel %vm186, %v530, 0
      %v542 = vsel %vm186, %v531, 0
      %v545 = vsel %vm186, %v532, 0
      %v548 = vsel %vm186, %v533, 0
      %550 = vmatpush.msra.mxu0 0.0
      %551 = vmatpush.msra.mxu0 0.0
      %552 = vmatpush.msra.mxu0 0.0
      %553 = vmatpush.msra.mxu0 0.0
      %554 = vmatpush.msra.mxu0 0.0
      %555 = vmatpush.msra.mxu0 0.0
      %556 = vmatpush.msra.mxu0 0.0
      %557 = vmatpush.msra.mxu0 0.0
      %558 = vmatpush.msra.mxu0 0.0
      %559 = vmatpush.msra.mxu0 0.0
      %560 = vmatpush.msra.mxu0 0.0
      %561 = vmatpush.msra.mxu0 0.0
      %562 = vmatpush.msra.mxu0 0.0
      %563 = vmatpush.msra.mxu0 0.0
      %564 = vmatpush.msra.mxu0 0.0
      %565 = vmatpush.msra.mxu0 %v536
      %566 = vmatmul.f32.gmra.mxu0 %v539
      %v567 = vpop.f32.mrf.mxu0
      %v568 = vadd.f32 0.0, %v567
      %569 = vmatmul.f32.gmra.mxu0 %v542
      %v570 = vpop.f32.mrf.mxu0
      %v571 = vadd.f32 0.0, %v570
      %572 = vmatmul.f32.gmra.mxu0 %v545
      %v573 = vpop.f32.mrf.mxu0
      %v574 = vadd.f32 0.0, %v573
      %575 = vmatmul.f32.gmra.mxu0 %v548
      %v576 = vpop.f32.mrf.mxu0
      %v577 = vadd.f32 0.0, %v576
      %578 = vdwg.mxu0
      %v579 = vadd.f32 %v526, %v568
      %v580 = vadd.f32 %v527, %v571
      %v581 = vadd.f32 %v528, %v574
      %v582 = vadd.f32 %v529, %v577
      %s583 = scalar_lea.vmem %s167, 32
      %584 = vst.msk [vmem:[%s583] sm:$0xff] %vm377, %v579
      %585 = vst.msk [vmem:[%s583 + $0x8] sm:$0xff] %vm377, %v580
      %586 = vst.msk [vmem:[%s583 + $0x10] sm:$0xff] %vm377, %v581
      %587 = vst.msk [vmem:[%s583 + $0x18] sm:$0xff] %vm377, %v582
      %v588 = vld [vmem:[%s479] sm:$0xff]
      %v589 = vld [vmem:[%s0] sm:$0xff]
      %v590 = vld [vmem:[%s0 + $0x8] sm:$0xff]
      %v591 = vld [vmem:[%s0 + $0x10] sm:$0xff]
      %v592 = vld [vmem:[%s0 + $0x18] sm:$0xff]
      %v593 = vld [vmem:[%s177] sm:$0xff]
      %v594 = vld [vmem:[%s177 + $0x8] sm:$0xff]
      %v595 = vld [vmem:[%s177 + $0x10] sm:$0xff]
      %v596 = vld [vmem:[%s177 + $0x18] sm:$0xff]
      %598 = vrot.lane.b32.xlu0 %v588, 127
      %v599 = vpop.permute.xlu0 %598
      %v602 = vsel %vm186, %v593, 0
      %v605 = vsel %vm186, %v594, 0
      %v608 = vsel %vm186, %v595, 0
      %v611 = vsel %vm186, %v596, 0
      %613 = vmatpush.msra.mxu0 0.0
      %614 = vmatpush.msra.mxu0 0.0
      %615 = vmatpush.msra.mxu0 0.0
      %616 = vmatpush.msra.mxu0 0.0
      %617 = vmatpush.msra.mxu0 0.0
      %618 = vmatpush.msra.mxu0 0.0
      %619 = vmatpush.msra.mxu0 0.0
      %620 = vmatpush.msra.mxu0 0.0
      %621 = vmatpush.msra.mxu0 0.0
      %622 = vmatpush.msra.mxu0 0.0
      %623 = vmatpush.msra.mxu0 0.0
      %624 = vmatpush.msra.mxu0 0.0
      %625 = vmatpush.msra.mxu0 0.0
      %626 = vmatpush.msra.mxu0 0.0
      %627 = vmatpush.msra.mxu0 0.0
      %628 = vmatpush.msra.mxu0 %v599
      %629 = vmatmul.f32.gmra.mxu0 %v602
      %v630 = vpop.f32.mrf.mxu0
      %v631 = vadd.f32 0.0, %v630
      %632 = vmatmul.f32.gmra.mxu0 %v605
      %v633 = vpop.f32.mrf.mxu0
      %v634 = vadd.f32 0.0, %v633
      %635 = vmatmul.f32.gmra.mxu0 %v608
      %v636 = vpop.f32.mrf.mxu0
      %v637 = vadd.f32 0.0, %v636
      %638 = vmatmul.f32.gmra.mxu0 %v611
      %v639 = vpop.f32.mrf.mxu0
      %v640 = vadd.f32 0.0, %v639
      %641 = vdwg.mxu0
      %v643 = vsel %vm186, %v589, 0
      %v646 = vsel %vm186, %v590, 0
      %v649 = vsel %vm186, %v591, 0
      %v652 = vsel %vm186, %v592, 0
      %654 = vmatpush.msra.mxu0 0.0
      %655 = vmatpush.msra.mxu0 0.0
      %656 = vmatpush.msra.mxu0 0.0
      %657 = vmatpush.msra.mxu0 0.0
      %658 = vmatpush.msra.mxu0 0.0
      %659 = vmatpush.msra.mxu0 0.0
      %660 = vmatpush.msra.mxu0 0.0
      %661 = vmatpush.msra.mxu0 0.0
      %662 = vmatpush.msra.mxu0 0.0
      %663 = vmatpush.msra.mxu0 0.0
      %664 = vmatpush.msra.mxu0 0.0
      %665 = vmatpush.msra.mxu0 0.0
      %666 = vmatpush.msra.mxu0 0.0
      %667 = vmatpush.msra.mxu0 0.0
      %668 = vmatpush.msra.mxu0 0.0
      %669 = vmatpush.msra.mxu0 %v588
      %670 = vmatmul.f32.gmra.mxu0 %v643
      %v671 = vpop.f32.mrf.mxu0
      %v672 = vadd.f32 %v631, %v671
      %673 = vmatmul.f32.gmra.mxu0 %v646
      %v674 = vpop.f32.mrf.mxu0
      %v675 = vadd.f32 %v634, %v674
      %676 = vmatmul.f32.gmra.mxu0 %v649
      %v677 = vpop.f32.mrf.mxu0
      %v678 = vadd.f32 %v637, %v677
      %679 = vmatmul.f32.gmra.mxu0 %v652
      %v680 = vpop.f32.mrf.mxu0
      %v681 = vadd.f32 %v640, %v680
      %682 = vdwg.mxu0
      %s683 = sadd.s32 %s169, 3
      %s684 = smul.u32 %s683, 8
      %s685 = scalar_lea.vmem %s157, %s684
      %v686 = vld [vmem:[%s685] sm:$0xff]
      %v687 = vld [vmem:[%s273] sm:$0xff]
      %v688 = vld [vmem:[%s273 + $0x8] sm:$0xff]
      %v689 = vld [vmem:[%s273 + $0x10] sm:$0xff]
      %v690 = vld [vmem:[%s273 + $0x18] sm:$0xff]
      %v692 = vsel %vm186, %v687, 0
      %v695 = vsel %vm186, %v688, 0
      %v698 = vsel %vm186, %v689, 0
      %v701 = vsel %vm186, %v690, 0
      %703 = vmatpush.msra.mxu0 0.0
      %704 = vmatpush.msra.mxu0 0.0
      %705 = vmatpush.msra.mxu0 0.0
      %706 = vmatpush.msra.mxu0 0.0
      %707 = vmatpush.msra.mxu0 0.0
      %708 = vmatpush.msra.mxu0 0.0
      %709 = vmatpush.msra.mxu0 0.0
      %710 = vmatpush.msra.mxu0 0.0
      %711 = vmatpush.msra.mxu0 0.0
      %712 = vmatpush.msra.mxu0 0.0
      %713 = vmatpush.msra.mxu0 0.0
      %714 = vmatpush.msra.mxu0 0.0
      %715 = vmatpush.msra.mxu0 0.0
      %716 = vmatpush.msra.mxu0 0.0
      %717 = vmatpush.msra.mxu0 0.0
      %718 = vmatpush.msra.mxu0 %v686
      %719 = vmatmul.f32.gmra.mxu0 %v692
      %v720 = vpop.f32.mrf.mxu0
      %v721 = vadd.f32 0.0, %v720
      %722 = vmatmul.f32.gmra.mxu0 %v695
      %v723 = vpop.f32.mrf.mxu0
      %v724 = vadd.f32 0.0, %v723
      %725 = vmatmul.f32.gmra.mxu0 %v698
      %v726 = vpop.f32.mrf.mxu0
      %v727 = vadd.f32 0.0, %v726
      %728 = vmatmul.f32.gmra.mxu0 %v701
      %v729 = vpop.f32.mrf.mxu0
      %v730 = vadd.f32 0.0, %v729
      %731 = vdwg.mxu0
      %v732 = vadd.f32 %v672, %v721
      %v733 = vadd.f32 %v675, %v724
      %v734 = vadd.f32 %v678, %v727
      %v735 = vadd.f32 %v681, %v730
      %v736 = vld [vmem:[%s323] sm:$0xff]
      %v737 = vld [vmem:[%s323 + $0x8] sm:$0xff]
      %v738 = vld [vmem:[%s323 + $0x10] sm:$0xff]
      %v739 = vld [vmem:[%s323 + $0x18] sm:$0xff]
      %741 = vrot.lane.b32.xlu0 %v686, 127
      %v742 = vpop.permute.xlu0 %741
      %v745 = vsel %vm186, %v736, 0
      %v748 = vsel %vm186, %v737, 0
      %v751 = vsel %vm186, %v738, 0
      %v754 = vsel %vm186, %v739, 0
      %756 = vmatpush.msra.mxu0 0.0
      %757 = vmatpush.msra.mxu0 0.0
      %758 = vmatpush.msra.mxu0 0.0
      %759 = vmatpush.msra.mxu0 0.0
      %760 = vmatpush.msra.mxu0 0.0
      %761 = vmatpush.msra.mxu0 0.0
      %762 = vmatpush.msra.mxu0 0.0
      %763 = vmatpush.msra.mxu0 0.0
      %764 = vmatpush.msra.mxu0 0.0
      %765 = vmatpush.msra.mxu0 0.0
      %766 = vmatpush.msra.mxu0 0.0
      %767 = vmatpush.msra.mxu0 0.0
      %768 = vmatpush.msra.mxu0 0.0
      %769 = vmatpush.msra.mxu0 0.0
      %770 = vmatpush.msra.mxu0 0.0
      %771 = vmatpush.msra.mxu0 %v742
      %772 = vmatmul.f32.gmra.mxu0 %v745
      %v773 = vpop.f32.mrf.mxu0
      %v774 = vadd.f32 0.0, %v773
      %775 = vmatmul.f32.gmra.mxu0 %v748
      %v776 = vpop.f32.mrf.mxu0
      %v777 = vadd.f32 0.0, %v776
      %778 = vmatmul.f32.gmra.mxu0 %v751
      %v779 = vpop.f32.mrf.mxu0
      %v780 = vadd.f32 0.0, %v779
      %781 = vmatmul.f32.gmra.mxu0 %v754
      %v782 = vpop.f32.mrf.mxu0
      %v783 = vadd.f32 0.0, %v782
      %784 = vdwg.mxu0
      %v785 = vadd.f32 %v732, %v774
      %v786 = vadd.f32 %v733, %v777
      %v787 = vadd.f32 %v734, %v780
      %v788 = vadd.f32 %v735, %v783
      %s789 = scalar_lea.vmem %s167, 64
      %790 = vst.msk [vmem:[%s789] sm:$0xff] %vm377, %v785
      %791 = vst.msk [vmem:[%s789 + $0x8] sm:$0xff] %vm377, %v786
      %792 = vst.msk [vmem:[%s789 + $0x10] sm:$0xff] %vm377, %v787
      %793 = vst.msk [vmem:[%s789 + $0x18] sm:$0xff] %vm377, %v788
      %v794 = vld [vmem:[%s685] sm:$0xff]
      %v795 = vld [vmem:[%s0] sm:$0xff]
      %v796 = vld [vmem:[%s0 + $0x8] sm:$0xff]
      %v797 = vld [vmem:[%s0 + $0x10] sm:$0xff]
      %v798 = vld [vmem:[%s0 + $0x18] sm:$0xff]
      %v799 = vld [vmem:[%s177] sm:$0xff]
      %v800 = vld [vmem:[%s177 + $0x8] sm:$0xff]
      %v801 = vld [vmem:[%s177 + $0x10] sm:$0xff]
      %v802 = vld [vmem:[%s177 + $0x18] sm:$0xff]
      %804 = vrot.lane.b32.xlu0 %v794, 127
      %v805 = vpop.permute.xlu0 %804
      %v808 = vsel %vm186, %v799, 0
      %v811 = vsel %vm186, %v800, 0
      %v814 = vsel %vm186, %v801, 0
      %v817 = vsel %vm186, %v802, 0
      %819 = vmatpush.msra.mxu0 0.0
      %820 = vmatpush.msra.mxu0 0.0
      %821 = vmatpush.msra.mxu0 0.0
      %822 = vmatpush.msra.mxu0 0.0
      %823 = vmatpush.msra.mxu0 0.0
      %824 = vmatpush.msra.mxu0 0.0
      %825 = vmatpush.msra.mxu0 0.0
      %826 = vmatpush.msra.mxu0 0.0
      %827 = vmatpush.msra.mxu0 0.0
      %828 = vmatpush.msra.mxu0 0.0
      %829 = vmatpush.msra.mxu0 0.0
      %830 = vmatpush.msra.mxu0 0.0
      %831 = vmatpush.msra.mxu0 0.0
      %832 = vmatpush.msra.mxu0 0.0
      %833 = vmatpush.msra.mxu0 0.0
      %834 = vmatpush.msra.mxu0 %v805
      %835 = vmatmul.f32.gmra.mxu0 %v808
      %v836 = vpop.f32.mrf.mxu0
      %v837 = vadd.f32 0.0, %v836
      %838 = vmatmul.f32.gmra.mxu0 %v811
      %v839 = vpop.f32.mrf.mxu0
      %v840 = vadd.f32 0.0, %v839
      %841 = vmatmul.f32.gmra.mxu0 %v814
      %v842 = vpop.f32.mrf.mxu0
      %v843 = vadd.f32 0.0, %v842
      %844 = vmatmul.f32.gmra.mxu0 %v817
      %v845 = vpop.f32.mrf.mxu0
      %v846 = vadd.f32 0.0, %v845
      %847 = vdwg.mxu0
      %v849 = vsel %vm186, %v795, 0
      %v852 = vsel %vm186, %v796, 0
      %v855 = vsel %vm186, %v797, 0
      %v858 = vsel %vm186, %v798, 0
      %860 = vmatpush.msra.mxu0 0.0
      %861 = vmatpush.msra.mxu0 0.0
      %862 = vmatpush.msra.mxu0 0.0
      %863 = vmatpush.msra.mxu0 0.0
      %864 = vmatpush.msra.mxu0 0.0
      %865 = vmatpush.msra.mxu0 0.0
      %866 = vmatpush.msra.mxu0 0.0
      %867 = vmatpush.msra.mxu0 0.0
      %868 = vmatpush.msra.mxu0 0.0
      %869 = vmatpush.msra.mxu0 0.0
      %870 = vmatpush.msra.mxu0 0.0
      %871 = vmatpush.msra.mxu0 0.0
      %872 = vmatpush.msra.mxu0 0.0
      %873 = vmatpush.msra.mxu0 0.0
      %874 = vmatpush.msra.mxu0 0.0
      %875 = vmatpush.msra.mxu0 %v794
      %876 = vmatmul.f32.gmra.mxu0 %v849
      %v877 = vpop.f32.mrf.mxu0
      %v878 = vadd.f32 %v837, %v877
      %879 = vmatmul.f32.gmra.mxu0 %v852
      %v880 = vpop.f32.mrf.mxu0
      %v881 = vadd.f32 %v840, %v880
      %882 = vmatmul.f32.gmra.mxu0 %v855
      %v883 = vpop.f32.mrf.mxu0
      %v884 = vadd.f32 %v843, %v883
      %885 = vmatmul.f32.gmra.mxu0 %v858
      %v886 = vpop.f32.mrf.mxu0
      %v887 = vadd.f32 %v846, %v886
      %888 = vdwg.mxu0
      %s889 = sadd.s32 %s169, 4
      %s890 = smul.u32 %s889, 8
      %s891 = scalar_lea.vmem %s157, %s890
      %v892 = vld [vmem:[%s891] sm:$0xff]
      %v893 = vld [vmem:[%s273] sm:$0xff]
      %v894 = vld [vmem:[%s273 + $0x8] sm:$0xff]
      %v895 = vld [vmem:[%s273 + $0x10] sm:$0xff]
      %v896 = vld [vmem:[%s273 + $0x18] sm:$0xff]
      %v898 = vsel %vm186, %v893, 0
      %v901 = vsel %vm186, %v894, 0
      %v904 = vsel %vm186, %v895, 0
      %v907 = vsel %vm186, %v896, 0
      %909 = vmatpush.msra.mxu0 0.0
      %910 = vmatpush.msra.mxu0 0.0
      %911 = vmatpush.msra.mxu0 0.0
      %912 = vmatpush.msra.mxu0 0.0
      %913 = vmatpush.msra.mxu0 0.0
      %914 = vmatpush.msra.mxu0 0.0
      %915 = vmatpush.msra.mxu0 0.0
      %916 = vmatpush.msra.mxu0 0.0
      %917 = vmatpush.msra.mxu0 0.0
      %918 = vmatpush.msra.mxu0 0.0
      %919 = vmatpush.msra.mxu0 0.0
      %920 = vmatpush.msra.mxu0 0.0
      %921 = vmatpush.msra.mxu0 0.0
      %922 = vmatpush.msra.mxu0 0.0
      %923 = vmatpush.msra.mxu0 0.0
      %924 = vmatpush.msra.mxu0 %v892
      %925 = vmatmul.f32.gmra.mxu0 %v898
      %v926 = vpop.f32.mrf.mxu0
      %v927 = vadd.f32 0.0, %v926
      %928 = vmatmul.f32.gmra.mxu0 %v901
      %v929 = vpop.f32.mrf.mxu0
      %v930 = vadd.f32 0.0, %v929
      %931 = vmatmul.f32.gmra.mxu0 %v904
      %v932 = vpop.f32.mrf.mxu0
      %v933 = vadd.f32 0.0, %v932
      %934 = vmatmul.f32.gmra.mxu0 %v907
      %v935 = vpop.f32.mrf.mxu0
      %v936 = vadd.f32 0.0, %v935
      %937 = vdwg.mxu0
      %v938 = vadd.f32 %v878, %v927
      %v939 = vadd.f32 %v881, %v930
      %v940 = vadd.f32 %v884, %v933
      %v941 = vadd.f32 %v887, %v936
      %v942 = vld [vmem:[%s323] sm:$0xff]
      %v943 = vld [vmem:[%s323 + $0x8] sm:$0xff]
      %v944 = vld [vmem:[%s323 + $0x10] sm:$0xff]
      %v945 = vld [vmem:[%s323 + $0x18] sm:$0xff]
      %947 = vrot.lane.b32.xlu0 %v892, 127
      %v948 = vpop.permute.xlu0 %947
      %v951 = vsel %vm186, %v942, 0
      %v954 = vsel %vm186, %v943, 0
      %v957 = vsel %vm186, %v944, 0
      %v960 = vsel %vm186, %v945, 0
      %962 = vmatpush.msra.mxu0 0.0
      %963 = vmatpush.msra.mxu0 0.0
      %964 = vmatpush.msra.mxu0 0.0
      %965 = vmatpush.msra.mxu0 0.0
      %966 = vmatpush.msra.mxu0 0.0
      %967 = vmatpush.msra.mxu0 0.0
      %968 = vmatpush.msra.mxu0 0.0
      %969 = vmatpush.msra.mxu0 0.0
      %970 = vmatpush.msra.mxu0 0.0
      %971 = vmatpush.msra.mxu0 0.0
      %972 = vmatpush.msra.mxu0 0.0
      %973 = vmatpush.msra.mxu0 0.0
      %974 = vmatpush.msra.mxu0 0.0
      %975 = vmatpush.msra.mxu0 0.0
      %976 = vmatpush.msra.mxu0 0.0
      %977 = vmatpush.msra.mxu0 %v948
      %978 = vmatmul.f32.gmra.mxu0 %v951
      %v979 = vpop.f32.mrf.mxu0
      %v980 = vadd.f32 0.0, %v979
      %981 = vmatmul.f32.gmra.mxu0 %v954
      %v982 = vpop.f32.mrf.mxu0
      %v983 = vadd.f32 0.0, %v982
      %984 = vmatmul.f32.gmra.mxu0 %v957
      %v985 = vpop.f32.mrf.mxu0
      %v986 = vadd.f32 0.0, %v985
      %987 = vmatmul.f32.gmra.mxu0 %v960
      %v988 = vpop.f32.mrf.mxu0
      %v989 = vadd.f32 0.0, %v988
      %990 = vdwg.mxu0
      %v991 = vadd.f32 %v938, %v980
      %v992 = vadd.f32 %v939, %v983
      %v993 = vadd.f32 %v940, %v986
      %v994 = vadd.f32 %v941, %v989
      %s995 = scalar_lea.vmem %s167, 96
      %996 = vst.msk [vmem:[%s995] sm:$0xff] %vm377, %v991
      %997 = vst.msk [vmem:[%s995 + $0x8] sm:$0xff] %vm377, %v992
      %998 = vst.msk [vmem:[%s995 + $0x10] sm:$0xff] %vm377, %v993
      %999 = vst.msk [vmem:[%s995 + $0x18] sm:$0xff] %vm377, %v994
      %v1000 = vld [vmem:[%s891] sm:$0xff]
      %v1001 = vld [vmem:[%s0] sm:$0xff]
      %v1002 = vld [vmem:[%s0 + $0x8] sm:$0xff]
      %v1003 = vld [vmem:[%s0 + $0x10] sm:$0xff]
      %v1004 = vld [vmem:[%s0 + $0x18] sm:$0xff]
      %v1005 = vld [vmem:[%s177] sm:$0xff]
      %v1006 = vld [vmem:[%s177 + $0x8] sm:$0xff]
      %v1007 = vld [vmem:[%s177 + $0x10] sm:$0xff]
      %v1008 = vld [vmem:[%s177 + $0x18] sm:$0xff]
      %1010 = vrot.lane.b32.xlu0 %v1000, 127
      %v1011 = vpop.permute.xlu0 %1010
      %v1014 = vsel %vm186, %v1005, 0
      %v1017 = vsel %vm186, %v1006, 0
      %v1020 = vsel %vm186, %v1007, 0
      %v1023 = vsel %vm186, %v1008, 0
      %1025 = vmatpush.msra.mxu0 0.0
      %1026 = vmatpush.msra.mxu0 0.0
      %1027 = vmatpush.msra.mxu0 0.0
      %1028 = vmatpush.msra.mxu0 0.0
      %1029 = vmatpush.msra.mxu0 0.0
      %1030 = vmatpush.msra.mxu0 0.0
      %1031 = vmatpush.msra.mxu0 0.0
      %1032 = vmatpush.msra.mxu0 0.0
      %1033 = vmatpush.msra.mxu0 0.0
      %1034 = vmatpush.msra.mxu0 0.0
      %1035 = vmatpush.msra.mxu0 0.0
      %1036 = vmatpush.msra.mxu0 0.0
      %1037 = vmatpush.msra.mxu0 0.0
      %1038 = vmatpush.msra.mxu0 0.0
      %1039 = vmatpush.msra.mxu0 0.0
      %1040 = vmatpush.msra.mxu0 %v1011
      %1041 = vmatmul.f32.gmra.mxu0 %v1014
      %v1042 = vpop.f32.mrf.mxu0
      %v1043 = vadd.f32 0.0, %v1042
      %1044 = vmatmul.f32.gmra.mxu0 %v1017
      %v1045 = vpop.f32.mrf.mxu0
      %v1046 = vadd.f32 0.0, %v1045
      %1047 = vmatmul.f32.gmra.mxu0 %v1020
      %v1048 = vpop.f32.mrf.mxu0
      %v1049 = vadd.f32 0.0, %v1048
      %1050 = vmatmul.f32.gmra.mxu0 %v1023
      %v1051 = vpop.f32.mrf.mxu0
      %v1052 = vadd.f32 0.0, %v1051
      %1053 = vdwg.mxu0
      %v1055 = vsel %vm186, %v1001, 0
      %v1058 = vsel %vm186, %v1002, 0
      %v1061 = vsel %vm186, %v1003, 0
      %v1064 = vsel %vm186, %v1004, 0
      %1066 = vmatpush.msra.mxu0 0.0
      %1067 = vmatpush.msra.mxu0 0.0
      %1068 = vmatpush.msra.mxu0 0.0
      %1069 = vmatpush.msra.mxu0 0.0
      %1070 = vmatpush.msra.mxu0 0.0
      %1071 = vmatpush.msra.mxu0 0.0
      %1072 = vmatpush.msra.mxu0 0.0
      %1073 = vmatpush.msra.mxu0 0.0
      %1074 = vmatpush.msra.mxu0 0.0
      %1075 = vmatpush.msra.mxu0 0.0
      %1076 = vmatpush.msra.mxu0 0.0
      %1077 = vmatpush.msra.mxu0 0.0
      %1078 = vmatpush.msra.mxu0 0.0
      %1079 = vmatpush.msra.mxu0 0.0
      %1080 = vmatpush.msra.mxu0 0.0
      %1081 = vmatpush.msra.mxu0 %v1000
      %1082 = vmatmul.f32.gmra.mxu0 %v1055
      %v1083 = vpop.f32.mrf.mxu0
      %v1084 = vadd.f32 %v1043, %v1083
      %1085 = vmatmul.f32.gmra.mxu0 %v1058
      %v1086 = vpop.f32.mrf.mxu0
      %v1087 = vadd.f32 %v1046, %v1086
      %1088 = vmatmul.f32.gmra.mxu0 %v1061
      %v1089 = vpop.f32.mrf.mxu0
      %v1090 = vadd.f32 %v1049, %v1089
      %1091 = vmatmul.f32.gmra.mxu0 %v1064
      %v1092 = vpop.f32.mrf.mxu0
      %v1093 = vadd.f32 %v1052, %v1092
      %1094 = vdwg.mxu0
      %s1095 = sadd.s32 %s169, 5
      %s1096 = smul.u32 %s1095, 8
      %s1097 = scalar_lea.vmem %s157, %s1096
      %v1098 = vld [vmem:[%s1097] sm:$0xff]
      %v1099 = vld [vmem:[%s273] sm:$0xff]
      %v1100 = vld [vmem:[%s273 + $0x8] sm:$0xff]
      %v1101 = vld [vmem:[%s273 + $0x10] sm:$0xff]
      %v1102 = vld [vmem:[%s273 + $0x18] sm:$0xff]
      %v1104 = vsel %vm186, %v1099, 0
      %v1107 = vsel %vm186, %v1100, 0
      %v1110 = vsel %vm186, %v1101, 0
      %v1113 = vsel %vm186, %v1102, 0
      %1115 = vmatpush.msra.mxu0 0.0
      %1116 = vmatpush.msra.mxu0 0.0
      %1117 = vmatpush.msra.mxu0 0.0
      %1118 = vmatpush.msra.mxu0 0.0
      %1119 = vmatpush.msra.mxu0 0.0
      %1120 = vmatpush.msra.mxu0 0.0
      %1121 = vmatpush.msra.mxu0 0.0
      %1122 = vmatpush.msra.mxu0 0.0
      %1123 = vmatpush.msra.mxu0 0.0
      %1124 = vmatpush.msra.mxu0 0.0
      %1125 = vmatpush.msra.mxu0 0.0
      %1126 = vmatpush.msra.mxu0 0.0
      %1127 = vmatpush.msra.mxu0 0.0
      %1128 = vmatpush.msra.mxu0 0.0
      %1129 = vmatpush.msra.mxu0 0.0
      %1130 = vmatpush.msra.mxu0 %v1098
      %1131 = vmatmul.f32.gmra.mxu0 %v1104
      %v1132 = vpop.f32.mrf.mxu0
      %v1133 = vadd.f32 0.0, %v1132
      %1134 = vmatmul.f32.gmra.mxu0 %v1107
      %v1135 = vpop.f32.mrf.mxu0
      %v1136 = vadd.f32 0.0, %v1135
      %1137 = vmatmul.f32.gmra.mxu0 %v1110
      %v1138 = vpop.f32.mrf.mxu0
      %v1139 = vadd.f32 0.0, %v1138
      %1140 = vmatmul.f32.gmra.mxu0 %v1113
      %v1141 = vpop.f32.mrf.mxu0
      %v1142 = vadd.f32 0.0, %v1141
      %1143 = vdwg.mxu0
      %v1144 = vadd.f32 %v1084, %v1133
      %v1145 = vadd.f32 %v1087, %v1136
      %v1146 = vadd.f32 %v1090, %v1139
      %v1147 = vadd.f32 %v1093, %v1142
      %v1148 = vld [vmem:[%s323] sm:$0xff]
      %v1149 = vld [vmem:[%s323 + $0x8] sm:$0xff]
      %v1150 = vld [vmem:[%s323 + $0x10] sm:$0xff]
      %v1151 = vld [vmem:[%s323 + $0x18] sm:$0xff]
      %1153 = vrot.lane.b32.xlu0 %v1098, 127
      %v1154 = vpop.permute.xlu0 %1153
      %v1157 = vsel %vm186, %v1148, 0
      %v1160 = vsel %vm186, %v1149, 0
      %v1163 = vsel %vm186, %v1150, 0
      %v1166 = vsel %vm186, %v1151, 0
      %1168 = vmatpush.msra.mxu0 0.0
      %1169 = vmatpush.msra.mxu0 0.0
      %1170 = vmatpush.msra.mxu0 0.0
      %1171 = vmatpush.msra.mxu0 0.0
      %1172 = vmatpush.msra.mxu0 0.0
      %1173 = vmatpush.msra.mxu0 0.0
      %1174 = vmatpush.msra.mxu0 0.0
      %1175 = vmatpush.msra.mxu0 0.0
      %1176 = vmatpush.msra.mxu0 0.0
      %1177 = vmatpush.msra.mxu0 0.0
      %1178 = vmatpush.msra.mxu0 0.0
      %1179 = vmatpush.msra.mxu0 0.0
      %1180 = vmatpush.msra.mxu0 0.0
      %1181 = vmatpush.msra.mxu0 0.0
      %1182 = vmatpush.msra.mxu0 0.0
      %1183 = vmatpush.msra.mxu0 %v1154
      %1184 = vmatmul.f32.gmra.mxu0 %v1157
      %v1185 = vpop.f32.mrf.mxu0
      %v1186 = vadd.f32 0.0, %v1185
      %1187 = vmatmul.f32.gmra.mxu0 %v1160
      %v1188 = vpop.f32.mrf.mxu0
      %v1189 = vadd.f32 0.0, %v1188
      %1190 = vmatmul.f32.gmra.mxu0 %v1163
      %v1191 = vpop.f32.mrf.mxu0
      %v1192 = vadd.f32 0.0, %v1191
      %1193 = vmatmul.f32.gmra.mxu0 %v1166
      %v1194 = vpop.f32.mrf.mxu0
      %v1195 = vadd.f32 0.0, %v1194
      %1196 = vdwg.mxu0
      %v1197 = vadd.f32 %v1144, %v1186
      %v1198 = vadd.f32 %v1145, %v1189
      %v1199 = vadd.f32 %v1146, %v1192
      %v1200 = vadd.f32 %v1147, %v1195
      %s1201 = scalar_lea.vmem %s167, 128
      %1202 = vst.msk [vmem:[%s1201] sm:$0xff] %vm377, %v1197
      %1203 = vst.msk [vmem:[%s1201 + $0x8] sm:$0xff] %vm377, %v1198
      %1204 = vst.msk [vmem:[%s1201 + $0x10] sm:$0xff] %vm377, %v1199
      %1205 = vst.msk [vmem:[%s1201 + $0x18] sm:$0xff] %vm377, %v1200
      %v1206 = vld [vmem:[%s1097] sm:$0xff]
      %v1207 = vld [vmem:[%s0] sm:$0xff]
      %v1208 = vld [vmem:[%s0 + $0x8] sm:$0xff]
      %v1209 = vld [vmem:[%s0 + $0x10] sm:$0xff]
      %v1210 = vld [vmem:[%s0 + $0x18] sm:$0xff]
      %v1211 = vld [vmem:[%s177] sm:$0xff]
      %v1212 = vld [vmem:[%s177 + $0x8] sm:$0xff]
      %v1213 = vld [vmem:[%s177 + $0x10] sm:$0xff]
      %v1214 = vld [vmem:[%s177 + $0x18] sm:$0xff]
      %1216 = vrot.lane.b32.xlu0 %v1206, 127
      %v1217 = vpop.permute.xlu0 %1216
      %v1220 = vsel %vm186, %v1211, 0
      %v1223 = vsel %vm186, %v1212, 0
      %v1226 = vsel %vm186, %v1213, 0
      %v1229 = vsel %vm186, %v1214, 0
      %1231 = vmatpush.msra.mxu0 0.0
      %1232 = vmatpush.msra.mxu0 0.0
      %1233 = vmatpush.msra.mxu0 0.0
      %1234 = vmatpush.msra.mxu0 0.0
      %1235 = vmatpush.msra.mxu0 0.0
      %1236 = vmatpush.msra.mxu0 0.0
      %1237 = vmatpush.msra.mxu0 0.0
      %1238 = vmatpush.msra.mxu0 0.0
      %1239 = vmatpush.msra.mxu0 0.0
      %1240 = vmatpush.msra.mxu0 0.0
      %1241 = vmatpush.msra.mxu0 0.0
      %1242 = vmatpush.msra.mxu0 0.0
      %1243 = vmatpush.msra.mxu0 0.0
      %1244 = vmatpush.msra.mxu0 0.0
      %1245 = vmatpush.msra.mxu0 0.0
      %1246 = vmatpush.msra.mxu0 %v1217
      %1247 = vmatmul.f32.gmra.mxu0 %v1220
      %v1248 = vpop.f32.mrf.mxu0
      %v1249 = vadd.f32 0.0, %v1248
      %1250 = vmatmul.f32.gmra.mxu0 %v1223
      %v1251 = vpop.f32.mrf.mxu0
      %v1252 = vadd.f32 0.0, %v1251
      %1253 = vmatmul.f32.gmra.mxu0 %v1226
      %v1254 = vpop.f32.mrf.mxu0
      %v1255 = vadd.f32 0.0, %v1254
      %1256 = vmatmul.f32.gmra.mxu0 %v1229
      %v1257 = vpop.f32.mrf.mxu0
      %v1258 = vadd.f32 0.0, %v1257
      %1259 = vdwg.mxu0
      %v1261 = vsel %vm186, %v1207, 0
      %v1264 = vsel %vm186, %v1208, 0
      %v1267 = vsel %vm186, %v1209, 0
      %v1270 = vsel %vm186, %v1210, 0
      %1272 = vmatpush.msra.mxu0 0.0
      %1273 = vmatpush.msra.mxu0 0.0
      %1274 = vmatpush.msra.mxu0 0.0
      %1275 = vmatpush.msra.mxu0 0.0
      %1276 = vmatpush.msra.mxu0 0.0
      %1277 = vmatpush.msra.mxu0 0.0
      %1278 = vmatpush.msra.mxu0 0.0
      %1279 = vmatpush.msra.mxu0 0.0
      %1280 = vmatpush.msra.mxu0 0.0
      %1281 = vmatpush.msra.mxu0 0.0
      %1282 = vmatpush.msra.mxu0 0.0
      %1283 = vmatpush.msra.mxu0 0.0
      %1284 = vmatpush.msra.mxu0 0.0
      %1285 = vmatpush.msra.mxu0 0.0
      %1286 = vmatpush.msra.mxu0 0.0
      %1287 = vmatpush.msra.mxu0 %v1206
      %1288 = vmatmul.f32.gmra.mxu0 %v1261
      %v1289 = vpop.f32.mrf.mxu0
      %v1290 = vadd.f32 %v1249, %v1289
      %1291 = vmatmul.f32.gmra.mxu0 %v1264
      %v1292 = vpop.f32.mrf.mxu0
      %v1293 = vadd.f32 %v1252, %v1292
      %1294 = vmatmul.f32.gmra.mxu0 %v1267
      %v1295 = vpop.f32.mrf.mxu0
      %v1296 = vadd.f32 %v1255, %v1295
      %1297 = vmatmul.f32.gmra.mxu0 %v1270
      %v1298 = vpop.f32.mrf.mxu0
      %v1299 = vadd.f32 %v1258, %v1298
      %1300 = vdwg.mxu0
      %s1301 = sadd.s32 %s169, 6
      %s1302 = smul.u32 %s1301, 8
      %s1303 = scalar_lea.vmem %s157, %s1302
      %v1304 = vld [vmem:[%s1303] sm:$0xff]
      %v1305 = vld [vmem:[%s273] sm:$0xff]
      %v1306 = vld [vmem:[%s273 + $0x8] sm:$0xff]
      %v1307 = vld [vmem:[%s273 + $0x10] sm:$0xff]
      %v1308 = vld [vmem:[%s273 + $0x18] sm:$0xff]
      %v1310 = vsel %vm186, %v1305, 0
      %v1313 = vsel %vm186, %v1306, 0
      %v1316 = vsel %vm186, %v1307, 0
      %v1319 = vsel %vm186, %v1308, 0
      %1321 = vmatpush.msra.mxu0 0.0
      %1322 = vmatpush.msra.mxu0 0.0
      %1323 = vmatpush.msra.mxu0 0.0
      %1324 = vmatpush.msra.mxu0 0.0
      %1325 = vmatpush.msra.mxu0 0.0
      %1326 = vmatpush.msra.mxu0 0.0
      %1327 = vmatpush.msra.mxu0 0.0
      %1328 = vmatpush.msra.mxu0 0.0
      %1329 = vmatpush.msra.mxu0 0.0
      %1330 = vmatpush.msra.mxu0 0.0
      %1331 = vmatpush.msra.mxu0 0.0
      %1332 = vmatpush.msra.mxu0 0.0
      %1333 = vmatpush.msra.mxu0 0.0
      %1334 = vmatpush.msra.mxu0 0.0
      %1335 = vmatpush.msra.mxu0 0.0
      %1336 = vmatpush.msra.mxu0 %v1304
      %1337 = vmatmul.f32.gmra.mxu0 %v1310
      %v1338 = vpop.f32.mrf.mxu0
      %v1339 = vadd.f32 0.0, %v1338
      %1340 = vmatmul.f32.gmra.mxu0 %v1313
      %v1341 = vpop.f32.mrf.mxu0
      %v1342 = vadd.f32 0.0, %v1341
      %1343 = vmatmul.f32.gmra.mxu0 %v1316
      %v1344 = vpop.f32.mrf.mxu0
      %v1345 = vadd.f32 0.0, %v1344
      %1346 = vmatmul.f32.gmra.mxu0 %v1319
      %v1347 = vpop.f32.mrf.mxu0
      %v1348 = vadd.f32 0.0, %v1347
      %1349 = vdwg.mxu0
      %v1350 = vadd.f32 %v1290, %v1339
      %v1351 = vadd.f32 %v1293, %v1342
      %v1352 = vadd.f32 %v1296, %v1345
      %v1353 = vadd.f32 %v1299, %v1348
      %v1354 = vld [vmem:[%s323] sm:$0xff]
      %v1355 = vld [vmem:[%s323 + $0x8] sm:$0xff]
      %v1356 = vld [vmem:[%s323 + $0x10] sm:$0xff]
      %v1357 = vld [vmem:[%s323 + $0x18] sm:$0xff]
      %1359 = vrot.lane.b32.xlu0 %v1304, 127
      %v1360 = vpop.permute.xlu0 %1359
      %v1363 = vsel %vm186, %v1354, 0
      %v1366 = vsel %vm186, %v1355, 0
      %v1369 = vsel %vm186, %v1356, 0
      %v1372 = vsel %vm186, %v1357, 0
      %1374 = vmatpush.msra.mxu0 0.0
      %1375 = vmatpush.msra.mxu0 0.0
      %1376 = vmatpush.msra.mxu0 0.0
      %1377 = vmatpush.msra.mxu0 0.0
      %1378 = vmatpush.msra.mxu0 0.0
      %1379 = vmatpush.msra.mxu0 0.0
      %1380 = vmatpush.msra.mxu0 0.0
      %1381 = vmatpush.msra.mxu0 0.0
      %1382 = vmatpush.msra.mxu0 0.0
      %1383 = vmatpush.msra.mxu0 0.0
      %1384 = vmatpush.msra.mxu0 0.0
      %1385 = vmatpush.msra.mxu0 0.0
      %1386 = vmatpush.msra.mxu0 0.0
      %1387 = vmatpush.msra.mxu0 0.0
      %1388 = vmatpush.msra.mxu0 0.0
      %1389 = vmatpush.msra.mxu0 %v1360
      %1390 = vmatmul.f32.gmra.mxu0 %v1363
      %v1391 = vpop.f32.mrf.mxu0
      %v1392 = vadd.f32 0.0, %v1391
      %1393 = vmatmul.f32.gmra.mxu0 %v1366
      %v1394 = vpop.f32.mrf.mxu0
      %v1395 = vadd.f32 0.0, %v1394
      %1396 = vmatmul.f32.gmra.mxu0 %v1369
      %v1397 = vpop.f32.mrf.mxu0
      %v1398 = vadd.f32 0.0, %v1397
      %1399 = vmatmul.f32.gmra.mxu0 %v1372
      %v1400 = vpop.f32.mrf.mxu0
      %v1401 = vadd.f32 0.0, %v1400
      %1402 = vdwg.mxu0
      %v1403 = vadd.f32 %v1350, %v1392
      %v1404 = vadd.f32 %v1351, %v1395
      %v1405 = vadd.f32 %v1352, %v1398
      %v1406 = vadd.f32 %v1353, %v1401
      %s1407 = scalar_lea.vmem %s167, 160
      %1408 = vst.msk [vmem:[%s1407] sm:$0xff] %vm377, %v1403
      %1409 = vst.msk [vmem:[%s1407 + $0x8] sm:$0xff] %vm377, %v1404
      %1410 = vst.msk [vmem:[%s1407 + $0x10] sm:$0xff] %vm377, %v1405
      %1411 = vst.msk [vmem:[%s1407 + $0x18] sm:$0xff] %vm377, %v1406
      %v1412 = vld [vmem:[%s1303] sm:$0xff]
      %v1413 = vld [vmem:[%s0] sm:$0xff]
      %v1414 = vld [vmem:[%s0 + $0x8] sm:$0xff]
      %v1415 = vld [vmem:[%s0 + $0x10] sm:$0xff]
      %v1416 = vld [vmem:[%s0 + $0x18] sm:$0xff]
      %v1417 = vld [vmem:[%s177] sm:$0xff]
      %v1418 = vld [vmem:[%s177 + $0x8] sm:$0xff]
      %v1419 = vld [vmem:[%s177 + $0x10] sm:$0xff]
      %v1420 = vld [vmem:[%s177 + $0x18] sm:$0xff]
      %1422 = vrot.lane.b32.xlu0 %v1412, 127
      %v1423 = vpop.permute.xlu0 %1422
      %v1426 = vsel %vm186, %v1417, 0
      %v1429 = vsel %vm186, %v1418, 0
      %v1432 = vsel %vm186, %v1419, 0
      %v1435 = vsel %vm186, %v1420, 0
      %1437 = vmatpush.msra.mxu0 0.0
      %1438 = vmatpush.msra.mxu0 0.0
      %1439 = vmatpush.msra.mxu0 0.0
      %1440 = vmatpush.msra.mxu0 0.0
      %1441 = vmatpush.msra.mxu0 0.0
      %1442 = vmatpush.msra.mxu0 0.0
      %1443 = vmatpush.msra.mxu0 0.0
      %1444 = vmatpush.msra.mxu0 0.0
      %1445 = vmatpush.msra.mxu0 0.0
      %1446 = vmatpush.msra.mxu0 0.0
      %1447 = vmatpush.msra.mxu0 0.0
      %1448 = vmatpush.msra.mxu0 0.0
      %1449 = vmatpush.msra.mxu0 0.0
      %1450 = vmatpush.msra.mxu0 0.0
      %1451 = vmatpush.msra.mxu0 0.0
      %1452 = vmatpush.msra.mxu0 %v1423
      %1453 = vmatmul.f32.gmra.mxu0 %v1426
      %v1454 = vpop.f32.mrf.mxu0
      %v1455 = vadd.f32 0.0, %v1454
      %1456 = vmatmul.f32.gmra.mxu0 %v1429
      %v1457 = vpop.f32.mrf.mxu0
      %v1458 = vadd.f32 0.0, %v1457
      %1459 = vmatmul.f32.gmra.mxu0 %v1432
      %v1460 = vpop.f32.mrf.mxu0
      %v1461 = vadd.f32 0.0, %v1460
      %1462 = vmatmul.f32.gmra.mxu0 %v1435
      %v1463 = vpop.f32.mrf.mxu0
      %v1464 = vadd.f32 0.0, %v1463
      %1465 = vdwg.mxu0
      %v1467 = vsel %vm186, %v1413, 0
      %v1470 = vsel %vm186, %v1414, 0
      %v1473 = vsel %vm186, %v1415, 0
      %v1476 = vsel %vm186, %v1416, 0
      %1478 = vmatpush.msra.mxu0 0.0
      %1479 = vmatpush.msra.mxu0 0.0
      %1480 = vmatpush.msra.mxu0 0.0
      %1481 = vmatpush.msra.mxu0 0.0
      %1482 = vmatpush.msra.mxu0 0.0
      %1483 = vmatpush.msra.mxu0 0.0
      %1484 = vmatpush.msra.mxu0 0.0
      %1485 = vmatpush.msra.mxu0 0.0
      %1486 = vmatpush.msra.mxu0 0.0
      %1487 = vmatpush.msra.mxu0 0.0
      %1488 = vmatpush.msra.mxu0 0.0
      %1489 = vmatpush.msra.mxu0 0.0
      %1490 = vmatpush.msra.mxu0 0.0
      %1491 = vmatpush.msra.mxu0 0.0
      %1492 = vmatpush.msra.mxu0 0.0
      %1493 = vmatpush.msra.mxu0 %v1412
      %1494 = vmatmul.f32.gmra.mxu0 %v1467
      %v1495 = vpop.f32.mrf.mxu0
      %v1496 = vadd.f32 %v1455, %v1495
      %1497 = vmatmul.f32.gmra.mxu0 %v1470
      %v1498 = vpop.f32.mrf.mxu0
      %v1499 = vadd.f32 %v1458, %v1498
      %1500 = vmatmul.f32.gmra.mxu0 %v1473
      %v1501 = vpop.f32.mrf.mxu0
      %v1502 = vadd.f32 %v1461, %v1501
      %1503 = vmatmul.f32.gmra.mxu0 %v1476
      %v1504 = vpop.f32.mrf.mxu0
      %v1505 = vadd.f32 %v1464, %v1504
      %1506 = vdwg.mxu0
      %s1507 = sadd.s32 %s169, 7
      %s1508 = smul.u32 %s1507, 8
      %s1509 = scalar_lea.vmem %s157, %s1508
      %v1510 = vld [vmem:[%s1509] sm:$0xff]
      %v1511 = vld [vmem:[%s273] sm:$0xff]
      %v1512 = vld [vmem:[%s273 + $0x8] sm:$0xff]
      %v1513 = vld [vmem:[%s273 + $0x10] sm:$0xff]
      %v1514 = vld [vmem:[%s273 + $0x18] sm:$0xff]
      %v1516 = vsel %vm186, %v1511, 0
      %v1519 = vsel %vm186, %v1512, 0
      %v1522 = vsel %vm186, %v1513, 0
      %v1525 = vsel %vm186, %v1514, 0
      %1527 = vmatpush.msra.mxu0 0.0
      %1528 = vmatpush.msra.mxu0 0.0
      %1529 = vmatpush.msra.mxu0 0.0
      %1530 = vmatpush.msra.mxu0 0.0
      %1531 = vmatpush.msra.mxu0 0.0
      %1532 = vmatpush.msra.mxu0 0.0
      %1533 = vmatpush.msra.mxu0 0.0
      %1534 = vmatpush.msra.mxu0 0.0
      %1535 = vmatpush.msra.mxu0 0.0
      %1536 = vmatpush.msra.mxu0 0.0
      %1537 = vmatpush.msra.mxu0 0.0
      %1538 = vmatpush.msra.mxu0 0.0
      %1539 = vmatpush.msra.mxu0 0.0
      %1540 = vmatpush.msra.mxu0 0.0
      %1541 = vmatpush.msra.mxu0 0.0
      %1542 = vmatpush.msra.mxu0 %v1510
      %1543 = vmatmul.f32.gmra.mxu0 %v1516
      %v1544 = vpop.f32.mrf.mxu0
      %v1545 = vadd.f32 0.0, %v1544
      %1546 = vmatmul.f32.gmra.mxu0 %v1519
      %v1547 = vpop.f32.mrf.mxu0
      %v1548 = vadd.f32 0.0, %v1547
      %1549 = vmatmul.f32.gmra.mxu0 %v1522
      %v1550 = vpop.f32.mrf.mxu0
      %v1551 = vadd.f32 0.0, %v1550
      %1552 = vmatmul.f32.gmra.mxu0 %v1525
      %v1553 = vpop.f32.mrf.mxu0
      %v1554 = vadd.f32 0.0, %v1553
      %1555 = vdwg.mxu0
      %v1556 = vadd.f32 %v1496, %v1545
      %v1557 = vadd.f32 %v1499, %v1548
      %v1558 = vadd.f32 %v1502, %v1551
      %v1559 = vadd.f32 %v1505, %v1554
      %v1560 = vld [vmem:[%s323] sm:$0xff]
      %v1561 = vld [vmem:[%s323 + $0x8] sm:$0xff]
      %v1562 = vld [vmem:[%s323 + $0x10] sm:$0xff]
      %v1563 = vld [vmem:[%s323 + $0x18] sm:$0xff]
      %1565 = vrot.lane.b32.xlu0 %v1510, 127
      %v1566 = vpop.permute.xlu0 %1565
      %v1569 = vsel %vm186, %v1560, 0
      %v1572 = vsel %vm186, %v1561, 0
      %v1575 = vsel %vm186, %v1562, 0
      %v1578 = vsel %vm186, %v1563, 0
      %1580 = vmatpush.msra.mxu0 0.0
      %1581 = vmatpush.msra.mxu0 0.0
      %1582 = vmatpush.msra.mxu0 0.0
      %1583 = vmatpush.msra.mxu0 0.0
      %1584 = vmatpush.msra.mxu0 0.0
      %1585 = vmatpush.msra.mxu0 0.0
      %1586 = vmatpush.msra.mxu0 0.0
      %1587 = vmatpush.msra.mxu0 0.0
      %1588 = vmatpush.msra.mxu0 0.0
      %1589 = vmatpush.msra.mxu0 0.0
      %1590 = vmatpush.msra.mxu0 0.0
      %1591 = vmatpush.msra.mxu0 0.0
      %1592 = vmatpush.msra.mxu0 0.0
      %1593 = vmatpush.msra.mxu0 0.0
      %1594 = vmatpush.msra.mxu0 0.0
      %1595 = vmatpush.msra.mxu0 %v1566
      %1596 = vmatmul.f32.gmra.mxu0 %v1569
      %v1597 = vpop.f32.mrf.mxu0
      %v1598 = vadd.f32 0.0, %v1597
      %1599 = vmatmul.f32.gmra.mxu0 %v1572
      %v1600 = vpop.f32.mrf.mxu0
      %v1601 = vadd.f32 0.0, %v1600
      %1602 = vmatmul.f32.gmra.mxu0 %v1575
      %v1603 = vpop.f32.mrf.mxu0
      %v1604 = vadd.f32 0.0, %v1603
      %1605 = vmatmul.f32.gmra.mxu0 %v1578
      %v1606 = vpop.f32.mrf.mxu0
      %v1607 = vadd.f32 0.0, %v1606
      %1608 = vdwg.mxu0
      %v1609 = vadd.f32 %v1556, %v1598
      %v1610 = vadd.f32 %v1557, %v1601
      %v1611 = vadd.f32 %v1558, %v1604
      %v1612 = vadd.f32 %v1559, %v1607
      %s1613 = scalar_lea.vmem %s167, 192
      %1614 = vst.msk [vmem:[%s1613] sm:$0xff] %vm377, %v1609
      %1615 = vst.msk [vmem:[%s1613 + $0x8] sm:$0xff] %vm377, %v1610
      %1616 = vst.msk [vmem:[%s1613 + $0x10] sm:$0xff] %vm377, %v1611
      %1617 = vst.msk [vmem:[%s1613 + $0x18] sm:$0xff] %vm377, %v1612
      %v1618 = vld [vmem:[%s1509] sm:$0xff]
      %v1619 = vld [vmem:[%s0] sm:$0xff]
      %v1620 = vld [vmem:[%s0 + $0x8] sm:$0xff]
      %v1621 = vld [vmem:[%s0 + $0x10] sm:$0xff]
      %v1622 = vld [vmem:[%s0 + $0x18] sm:$0xff]
      %v1623 = vld [vmem:[%s177] sm:$0xff]
      %v1624 = vld [vmem:[%s177 + $0x8] sm:$0xff]
      %v1625 = vld [vmem:[%s177 + $0x10] sm:$0xff]
      %v1626 = vld [vmem:[%s177 + $0x18] sm:$0xff]
      %1628 = vrot.lane.b32.xlu0 %v1618, 127
      %v1629 = vpop.permute.xlu0 %1628
      %v1632 = vsel %vm186, %v1623, 0
      %v1635 = vsel %vm186, %v1624, 0
      %v1638 = vsel %vm186, %v1625, 0
      %v1641 = vsel %vm186, %v1626, 0
      %1643 = vmatpush.msra.mxu0 0.0
      %1644 = vmatpush.msra.mxu0 0.0
      %1645 = vmatpush.msra.mxu0 0.0
      %1646 = vmatpush.msra.mxu0 0.0
      %1647 = vmatpush.msra.mxu0 0.0
      %1648 = vmatpush.msra.mxu0 0.0
      %1649 = vmatpush.msra.mxu0 0.0
      %1650 = vmatpush.msra.mxu0 0.0
      %1651 = vmatpush.msra.mxu0 0.0
      %1652 = vmatpush.msra.mxu0 0.0
      %1653 = vmatpush.msra.mxu0 0.0
      %1654 = vmatpush.msra.mxu0 0.0
      %1655 = vmatpush.msra.mxu0 0.0
      %1656 = vmatpush.msra.mxu0 0.0
      %1657 = vmatpush.msra.mxu0 0.0
      %1658 = vmatpush.msra.mxu0 %v1629
      %1659 = vmatmul.f32.gmra.mxu0 %v1632
      %v1660 = vpop.f32.mrf.mxu0
      %v1661 = vadd.f32 0.0, %v1660
      %1662 = vmatmul.f32.gmra.mxu0 %v1635
      %v1663 = vpop.f32.mrf.mxu0
      %v1664 = vadd.f32 0.0, %v1663
      %1665 = vmatmul.f32.gmra.mxu0 %v1638
      %v1666 = vpop.f32.mrf.mxu0
      %v1667 = vadd.f32 0.0, %v1666
      %1668 = vmatmul.f32.gmra.mxu0 %v1641
      %v1669 = vpop.f32.mrf.mxu0
      %v1670 = vadd.f32 0.0, %v1669
      %1671 = vdwg.mxu0
      %v1673 = vsel %vm186, %v1619, 0
      %v1676 = vsel %vm186, %v1620, 0
      %v1679 = vsel %vm186, %v1621, 0
      %v1682 = vsel %vm186, %v1622, 0
      %1684 = vmatpush.msra.mxu0 0.0
      %1685 = vmatpush.msra.mxu0 0.0
      %1686 = vmatpush.msra.mxu0 0.0
      %1687 = vmatpush.msra.mxu0 0.0
      %1688 = vmatpush.msra.mxu0 0.0
      %1689 = vmatpush.msra.mxu0 0.0
      %1690 = vmatpush.msra.mxu0 0.0
      %1691 = vmatpush.msra.mxu0 0.0
      %1692 = vmatpush.msra.mxu0 0.0
      %1693 = vmatpush.msra.mxu0 0.0
      %1694 = vmatpush.msra.mxu0 0.0
      %1695 = vmatpush.msra.mxu0 0.0
      %1696 = vmatpush.msra.mxu0 0.0
      %1697 = vmatpush.msra.mxu0 0.0
      %1698 = vmatpush.msra.mxu0 0.0
      %1699 = vmatpush.msra.mxu0 %v1618
      %1700 = vmatmul.f32.gmra.mxu0 %v1673
      %v1701 = vpop.f32.mrf.mxu0
      %v1702 = vadd.f32 %v1661, %v1701
      %1703 = vmatmul.f32.gmra.mxu0 %v1676
      %v1704 = vpop.f32.mrf.mxu0
      %v1705 = vadd.f32 %v1664, %v1704
      %1706 = vmatmul.f32.gmra.mxu0 %v1679
      %v1707 = vpop.f32.mrf.mxu0
      %v1708 = vadd.f32 %v1667, %v1707
      %1709 = vmatmul.f32.gmra.mxu0 %v1682
      %v1710 = vpop.f32.mrf.mxu0
      %v1711 = vadd.f32 %v1670, %v1710
      %1712 = vdwg.mxu0
      %s1713 = sadd.s32 %s169, 8
      %s1714 = smul.u32 %s1713, 8
      %s1715 = scalar_lea.vmem %s157, %s1714
      %v1716 = vld [vmem:[%s1715] sm:$0xff]
      %v1717 = vld [vmem:[%s273] sm:$0xff]
      %v1718 = vld [vmem:[%s273 + $0x8] sm:$0xff]
      %v1719 = vld [vmem:[%s273 + $0x10] sm:$0xff]
      %v1720 = vld [vmem:[%s273 + $0x18] sm:$0xff]
      %v1722 = vsel %vm186, %v1717, 0
      %v1725 = vsel %vm186, %v1718, 0
      %v1728 = vsel %vm186, %v1719, 0
      %v1731 = vsel %vm186, %v1720, 0
      %1733 = vmatpush.msra.mxu0 0.0
      %1734 = vmatpush.msra.mxu0 0.0
      %1735 = vmatpush.msra.mxu0 0.0
      %1736 = vmatpush.msra.mxu0 0.0
      %1737 = vmatpush.msra.mxu0 0.0
      %1738 = vmatpush.msra.mxu0 0.0
      %1739 = vmatpush.msra.mxu0 0.0
      %1740 = vmatpush.msra.mxu0 0.0
      %1741 = vmatpush.msra.mxu0 0.0
      %1742 = vmatpush.msra.mxu0 0.0
      %1743 = vmatpush.msra.mxu0 0.0
      %1744 = vmatpush.msra.mxu0 0.0
      %1745 = vmatpush.msra.mxu0 0.0
      %1746 = vmatpush.msra.mxu0 0.0
      %1747 = vmatpush.msra.mxu0 0.0
      %1748 = vmatpush.msra.mxu0 %v1716
      %1749 = vmatmul.f32.gmra.mxu0 %v1722
      %v1750 = vpop.f32.mrf.mxu0
      %v1751 = vadd.f32 0.0, %v1750
      %1752 = vmatmul.f32.gmra.mxu0 %v1725
      %v1753 = vpop.f32.mrf.mxu0
      %v1754 = vadd.f32 0.0, %v1753
      %1755 = vmatmul.f32.gmra.mxu0 %v1728
      %v1756 = vpop.f32.mrf.mxu0
      %v1757 = vadd.f32 0.0, %v1756
      %1758 = vmatmul.f32.gmra.mxu0 %v1731
      %v1759 = vpop.f32.mrf.mxu0
      %v1760 = vadd.f32 0.0, %v1759
      %1761 = vdwg.mxu0
      %v1762 = vadd.f32 %v1702, %v1751
      %v1763 = vadd.f32 %v1705, %v1754
      %v1764 = vadd.f32 %v1708, %v1757
      %v1765 = vadd.f32 %v1711, %v1760
      %v1766 = vld [vmem:[%s323] sm:$0xff]
      %v1767 = vld [vmem:[%s323 + $0x8] sm:$0xff]
      %v1768 = vld [vmem:[%s323 + $0x10] sm:$0xff]
      %v1769 = vld [vmem:[%s323 + $0x18] sm:$0xff]
      %1771 = vrot.lane.b32.xlu0 %v1716, 127
      %v1772 = vpop.permute.xlu0 %1771
      %v1775 = vsel %vm186, %v1766, 0
      %v1778 = vsel %vm186, %v1767, 0
      %v1781 = vsel %vm186, %v1768, 0
      %v1784 = vsel %vm186, %v1769, 0
      %1786 = vmatpush.msra.mxu0 0.0
      %1787 = vmatpush.msra.mxu0 0.0
      %1788 = vmatpush.msra.mxu0 0.0
      %1789 = vmatpush.msra.mxu0 0.0
      %1790 = vmatpush.msra.mxu0 0.0
      %1791 = vmatpush.msra.mxu0 0.0
      %1792 = vmatpush.msra.mxu0 0.0
      %1793 = vmatpush.msra.mxu0 0.0
      %1794 = vmatpush.msra.mxu0 0.0
      %1795 = vmatpush.msra.mxu0 0.0
      %1796 = vmatpush.msra.mxu0 0.0
      %1797 = vmatpush.msra.mxu0 0.0
      %1798 = vmatpush.msra.mxu0 0.0
      %1799 = vmatpush.msra.mxu0 0.0
      %1800 = vmatpush.msra.mxu0 0.0
      %1801 = vmatpush.msra.mxu0 %v1772
      %1802 = vmatmul.f32.gmra.mxu0 %v1775
      %v1803 = vpop.f32.mrf.mxu0
      %v1804 = vadd.f32 0.0, %v1803
      %1805 = vmatmul.f32.gmra.mxu0 %v1778
      %v1806 = vpop.f32.mrf.mxu0
      %v1807 = vadd.f32 0.0, %v1806
      %1808 = vmatmul.f32.gmra.mxu0 %v1781
      %v1809 = vpop.f32.mrf.mxu0
      %v1810 = vadd.f32 0.0, %v1809
      %1811 = vmatmul.f32.gmra.mxu0 %v1784
      %v1812 = vpop.f32.mrf.mxu0
      %v1813 = vadd.f32 0.0, %v1812
      %1814 = vdwg.mxu0
      %v1815 = vadd.f32 %v1762, %v1804
      %v1816 = vadd.f32 %v1763, %v1807
      %v1817 = vadd.f32 %v1764, %v1810
      %v1818 = vadd.f32 %v1765, %v1813
      %s1819 = scalar_lea.vmem %s167, 224
      %1820 = vst.msk [vmem:[%s1819] sm:$0xff] %vm377, %v1815
      %1821 = vst.msk [vmem:[%s1819 + $0x8] sm:$0xff] %vm377, %v1816
      %1822 = vst.msk [vmem:[%s1819 + $0x10] sm:$0xff] %vm377, %v1817
      %1823 = vst.msk [vmem:[%s1819 + $0x18] sm:$0xff] %vm377, %v1818
      %s1824 = smul.u32 8, %s18
      %p1825 = scmp.lt.s32.totalorder %s17, 1
      %s1826 = scalar_select %p1825, %s17, 1
      %p1827 = scmp.lt.s32.totalorder %s1824, 23
      %s1828 = scalar_select %p1827, %s1824, 23
      %s1829 = smul.addr %s1828, 4
      %s1830 = smul.addr %s1826, 96
      %s1831 = sadd.s32 %s1829, %s1830
      %s1832 = smul.addr %s1831, 8
      %s1833 = scalar_lea.vmem %s2, %s1832
      // Predicated region
      $region29: #{conv_transpose2d.1} parent=27 // pred_check
        %p1834 = pneg %p92
      $region30: #{conv_transpose2d.1} parent=27 // pred_check_branch
        %1836 = sbr.rel (%p1834) target = $region32
      $region31: #{conv_transpose2d.1} parent=27 // pred_region
        %s1837 = smul.u32 8, %s18
      $region32: #{conv_transpose2d.1} parent=27 // pred_fallthru
        _
    $region28: #{conv_transpose2d.1} parent=5 // pred_fallthru
      _
    %p1838 = scmp.le.s32.totalorder 2, %s8
    // Predicated region
    $region33: #{conv_transpose2d.1} parent=5 // pred_check
      %p1839 = pneg %p1838
    $region34: #{conv_transpose2d.1} parent=5 // pred_check_branch
      %1841 = sbr.rel (%p1839) target = $region36
    $region35: #{conv_transpose2d.1} parent=5 // pred_region
      %s1842 = ssub.s32 %s8, 2
      // Predicated region
      $region37: #{conv_transpose2d.1} parent=35 // pred_check
        %p1843 = pneg %p98
      $region38: #{conv_transpose2d.1} parent=35 // pred_check_branch
        %1845 = sbr.rel (%p1843) target = $region40
      $region39: #{conv_transpose2d.1} parent=35 // pred_region
        %s1846 = smul.u32 8, %s20
        %p1847 = scmp.lt.s32.totalorder %s19, 1
        %s1848 = scalar_select %p1847, %s19, 1
        %p1849 = scmp.lt.s32.totalorder %s1846, 23
        %s1850 = scalar_select %p1849, %s1846, 23
        %s1851 = smul.addr %s1850, 4
        %s1852 = smul.addr %s1848, 96
        %s1853 = sadd.s32 %s1851, %s1852
        %s1854 = smul.addr %s1853, 8
        %s1855 = scalar_lea.vmem %s2, %s1854
      $region40: #{conv_transpose2d.1} parent=35 // pred_fallthru
        _
    $region36: #{conv_transpose2d.1} parent=5 // pred_fallthru
      _
  $region6: #{conv_transpose2d.1} parent=0 // loop_footer
    %s12 = sadd.s32 1, %s8
  $region7: #{conv_transpose2d.1} parent=0 // loop_footer_branch
    %7 = sbr.rel target = $region3
  $region8: #{conv_transpose2d.1} parent=0 // loop_exit
    _

</llo_original>
